<compile_context>
chip_gen: v7x
topology: tpu7x:2x2x1
jax: 0.10.0
libtpu: 0.0.40
codegen_flags: <defaults>
</compile_context>

<pallas_src>
import math

import jax
import jax.numpy as jnp
from jax.experimental import pallas as pl
from jax.experimental.pallas import tpu as pltpu


LN_EPS = 1e-5
LEAK = 0.2


def field_transform_kernel(
    x_ref,                       # [TB, F] f32
    w1_ref, w2_ref, w3_ref, w4_ref,   # bf16: [F,H], [H,H], [H,H], [H,F]
    vec_ref,                     # [9, H] f32: b1,g1,be1,b2,g2,be2,b3,g3,be3
    b4_ref,                      # [1, F] f32
    o_ref,                       # [TB, F] f32
):
    x = x_ref[...]               # f32
    identity = x

    def block(h_in_f32, w_ref, bias, gamma, beta):
        # bf16 matmul, f32 accumulate on the MXU.
        h = jnp.dot(
            h_in_f32.astype(jnp.bfloat16),
            w_ref[...],
            preferred_element_type=jnp.float32,
        ) + bias
        # LayerNorm (biased variance, eps=1e-5, affine) in f32.
        mean = jnp.mean(h, axis=-1, keepdims=True)
        diff = h - mean
        var = jnp.mean(diff * diff, axis=-1, keepdims=True)
        h = diff * jax.lax.rsqrt(var + LN_EPS) * gamma + beta
        # LeakyReLU(0.2) as a single mul+max.
        return jnp.maximum(h, LEAK * h)

    b1, g1, be1 = vec_ref[0:1, :], vec_ref[1:2, :], vec_ref[2:3, :]
    b2, g2, be2 = vec_ref[3:4, :], vec_ref[4:5, :], vec_ref[5:6, :]
    b3, g3, be3 = vec_ref[6:7, :], vec_ref[7:8, :], vec_ref[8:9, :]

    h = block(x, w1_ref, b1, g1, be1)
    h = block(h, w2_ref, b2, g2, be2)
    h = block(h, w3_ref, b3, g3, be3)

    out = jnp.dot(
        h.astype(jnp.bfloat16),
        w4_ref[...],
        preferred_element_type=jnp.float32,
    ) + b4_ref[...]

    o_ref[...] = out + identity


def field_transform_net(x, packed_params, *, tb=128):
    """x: [B, F] f32. packed_params: (w1,w2,w3,w4 bf16, vec [9,H] f32, b4 [1,F] f32)."""
    w1, w2, w3, w4, vec, b4 = packed_params
    B, F = x.shape
    H = w1.shape[1]

    # Pad batch up to a multiple of the batch tile (zeros flow through cleanly).
    tb = min(tb, max(8, B))
    pad_b = (-B) % tb
    if pad_b:
        x = jnp.pad(x, ((0, pad_b), (0, 0)))
    Bp = B + pad_b
    grid = (Bp // tb,)

    out = pl.pallas_call(
        field_transform_kernel,
        out_shape=jax.ShapeDtypeStruct((Bp, F), jnp.float32),
        grid_spec=pltpu.PrefetchScalarGridSpec(
            num_scalar_prefetch=0,
            grid=grid,
            in_specs=[
                pl.BlockSpec((tb, F), lambda i: (i, 0)),   # x tile, pipelined
                pl.BlockSpec((F, H), lambda i: (0, 0)),    # w1 (resident)
                pl.BlockSpec((H, H), lambda i: (0, 0)),    # w2 (resident)
                pl.BlockSpec((H, H), lambda i: (0, 0)),    # w3 (resident)
                pl.BlockSpec((H, F), lambda i: (0, 0)),    # w4 (resident)
                pl.BlockSpec((9, H), lambda i: (0, 0)),    # packed bias/LN params
                pl.BlockSpec((1, F), lambda i: (0, 0)),    # b4
            ],
            out_specs=pl.BlockSpec((tb, F), lambda i: (i, 0)),
        ),
        compiler_params=pltpu.CompilerParams(
            dimension_semantics=("parallel",),
            vmem_limit_bytes=32 * 1024 * 1024,
        ),
    )(x, w1, w2, w3, w4, vec, b4)

    if pad_b:
        out = out[:B]
    return out


def init_params(key, input_size, hidden_size):
    """Xavier-uniform Linear weights (stored [in, out]), zero Linear biases,
    ones/zeros LayerNorm affine params — matching the PyTorch module.
    Returns the packed operand tuple used by the kernel."""

    def xavier(key, fan_in, fan_out):
        limit = math.sqrt(6.0 / (fan_in + fan_out))
        return jax.random.uniform(
            key, (fan_in, fan_out), minval=-limit, maxval=limit, dtype=jnp.float32
        )

    k1, k2, k3, k4 = jax.random.split(key, 4)
    F, H = input_size, hidden_size

    w1 = xavier(k1, F, H).astype(jnp.bfloat16)
    w2 = xavier(k2, H, H).astype(jnp.bfloat16)
    w3 = xavier(k3, H, H).astype(jnp.bfloat16)
    w4 = xavier(k4, H, F).astype(jnp.bfloat16)

    zeros_h = jnp.zeros((H,), jnp.float32)
    ones_h = jnp.ones((H,), jnp.float32)
    # rows: b1,g1,be1, b2,g2,be2, b3,g3,be3
    vec = jnp.stack(
        [zeros_h, ones_h, zeros_h,
         zeros_h, ones_h, zeros_h,
         zeros_h, ones_h, zeros_h], axis=0
    )
    b4 = jnp.zeros((1, F), jnp.float32)

    return (w1, w2, w3, w4, vec, b4)


def reference_forward(x, packed_params):
    """Pure-JAX reference mirroring the kernel's bf16-matmul / f32-LN math."""
    w1, w2, w3, w4, vec, b4 = packed_params
    identity = x

    def block(h, w, b, g, be):
        h = jnp.dot(h.astype(jnp.bfloat16), w, preferred_element_type=jnp.float32) + b
        mean = jnp.mean(h, axis=-1, keepdims=True)
        var = jnp.mean((h - mean) ** 2, axis=-1, keepdims=True)
        h = (h - mean) * jax.lax.rsqrt(var + LN_EPS) * g + be
        return jnp.maximum(h, LEAK * h)

    b1, g1, be1 = vec[0:1], vec[1:2], vec[2:3]
    b2, g2, be2 = vec[3:4], vec[4:5], vec[5:6]
    b3, g3, be3 = vec[6:7], vec[7:8], vec[8:9]

    h = block(x, w1, b1, g1, be1)
    h = block(h, w2, b2, g2, be2)
    h = block(h, w3, b3, g3, be3)
    out = jnp.dot(h.astype(jnp.bfloat16), w4, preferred_element_type=jnp.float32) + b4
    return out + identity


if __name__ == "__main__":
    # lattice_size = 8 -> input_size = 2*8*8 = 128; hidden_size = 256.
    # batch = 256 with TB = 128 -> 2 grid steps, weights resident across steps.
    lattice_size = 8
    hidden_size = 256
    batch = 256
    input_size = 2 * lattice_size * lattice_size

    key = jax.random.PRNGKey(0)
    kx, kp = jax.random.split(key)
    x = jax.random.normal(kx, (batch, input_size), dtype=jnp.float32)
    params = init_params(kp, input_size, hidden_size)

    out = field_transform_net(x, params, tb=128)
    out = jax.block_until_ready(out)

    ref = reference_forward(x, params)
    assert out.shape == (batch, input_size)
    assert jnp.allclose(out, ref, atol=1e-2, rtol=1e-2), "mismatch vs reference"

    print("KERNEL_OK")
</pallas_src>

<mosaic_0001>
module attributes {stable_mosaic.version = 11 : i64} {
  func.func @field_transform_kernel(%arg0: i32, %arg1: memref<128x128xf32, #tpu.memory_space<vmem>>, %arg2: memref<128x256xbf16, #tpu.memory_space<vmem>>, %arg3: memref<256x256xbf16, #tpu.memory_space<vmem>>, %arg4: memref<256x256xbf16, #tpu.memory_space<vmem>>, %arg5: memref<256x128xbf16, #tpu.memory_space<vmem>>, %arg6: memref<9x256xf32, #tpu.memory_space<vmem>>, %arg7: memref<1x128xf32, #tpu.memory_space<vmem>>, %arg8: memref<128x128xf32, #tpu.memory_space<vmem>>) attributes {dimension_semantics = [#tpu.dimension_semantics<parallel>], iteration_bounds = array<i64: 2>, scalar_prefetch = 0 : i64, scratch_operands = 0 : i64, tpu.core_type = #tpu.core_type<tc>, window_params = [{transform_indices = @transform_0, window_bounds = array<i64: 128, 128>}, {pipeline_mode = #tpu.pipeline_mode<synchronous>, transform_indices = @transform_1, window_bounds = array<i64: 128, 256>}, {pipeline_mode = #tpu.pipeline_mode<synchronous>, transform_indices = @transform_2, window_bounds = array<i64: 256, 256>}, {pipeline_mode = #tpu.pipeline_mode<synchronous>, transform_indices = @transform_3, window_bounds = array<i64: 256, 256>}, {pipeline_mode = #tpu.pipeline_mode<synchronous>, transform_indices = @transform_4, window_bounds = array<i64: 256, 128>}, {pipeline_mode = #tpu.pipeline_mode<synchronous>, transform_indices = @transform_5, window_bounds = array<i64: 9, 256>}, {pipeline_mode = #tpu.pipeline_mode<synchronous>, transform_indices = @transform_6, window_bounds = array<i64: 1, 128>}, {transform_indices = @transform_7, window_bounds = array<i64: 128, 128>}]} {
    %c0 = arith.constant 0 : index
    %c0_0 = arith.constant 0 : index
    %0 = vector.load %arg1[%c0, %c0_0] : memref<128x128xf32, #tpu.memory_space<vmem>>, vector<128x128xf32>
    %c0_1 = arith.constant 0 : index
    %c0_2 = arith.constant 0 : index
    %1 = vector.load %arg6[%c0_1, %c0_2] : memref<9x256xf32, #tpu.memory_space<vmem>>, vector<1x256xf32>
    %c1 = arith.constant 1 : index
    %c0_3 = arith.constant 0 : index
    %2 = vector.load %arg6[%c1, %c0_3] : memref<9x256xf32, #tpu.memory_space<vmem>>, vector<1x256xf32>
    %c2 = arith.constant 2 : index
    %c0_4 = arith.constant 0 : index
    %3 = vector.load %arg6[%c2, %c0_4] : memref<9x256xf32, #tpu.memory_space<vmem>>, vector<1x256xf32>
    %c3 = arith.constant 3 : index
    %c0_5 = arith.constant 0 : index
    %4 = vector.load %arg6[%c3, %c0_5] : memref<9x256xf32, #tpu.memory_space<vmem>>, vector<1x256xf32>
    %c4 = arith.constant 4 : index
    %c0_6 = arith.constant 0 : index
    %5 = vector.load %arg6[%c4, %c0_6] : memref<9x256xf32, #tpu.memory_space<vmem>>, vector<1x256xf32>
    %c5 = arith.constant 5 : index
    %c0_7 = arith.constant 0 : index
    %6 = vector.load %arg6[%c5, %c0_7] : memref<9x256xf32, #tpu.memory_space<vmem>>, vector<1x256xf32>
    %c6 = arith.constant 6 : index
    %c0_8 = arith.constant 0 : index
    %7 = vector.load %arg6[%c6, %c0_8] : memref<9x256xf32, #tpu.memory_space<vmem>>, vector<1x256xf32>
    %c7 = arith.constant 7 : index
    %c0_9 = arith.constant 0 : index
    %8 = vector.load %arg6[%c7, %c0_9] : memref<9x256xf32, #tpu.memory_space<vmem>>, vector<1x256xf32>
    %c8 = arith.constant 8 : index
    %c0_10 = arith.constant 0 : index
    %9 = vector.load %arg6[%c8, %c0_10] : memref<9x256xf32, #tpu.memory_space<vmem>>, vector<1x256xf32>
    %10 = arith.truncf %0 : vector<128x128xf32> to vector<128x128xbf16>
    %c0_11 = arith.constant 0 : index
    %c0_12 = arith.constant 0 : index
    %11 = vector.load %arg2[%c0_11, %c0_12] : memref<128x256xbf16, #tpu.memory_space<vmem>>, vector<128x256xbf16>
    %cst = arith.constant dense<0.000000e+00> : vector<128x256xf32>
    %12 = tpu.matmul %10, %11, %cst {dimension_numbers = #tpu.dot_dimension_numbers<[1], [0], [0], [1], [0, 0, 1, 1], [], []>} : vector<128x128xbf16>, vector<128x256xbf16>, vector<128x256xf32> -> vector<128x256xf32>
    %13 = vector.broadcast %1 : vector<1x256xf32> to vector<128x256xf32>
    %14 = arith.addf %12, %13 : vector<128x256xf32>
    %cst_13 = arith.constant dense<0.000000e+00> : vector<128xf32>
    %15 = vector.multi_reduction <add>, %14, %cst_13 [1] : vector<128x256xf32> to vector<128xf32>
    %16 = vector.shape_cast %15 : vector<128xf32> to vector<128x1xf32>
    %cst_14 = arith.constant 2.560000e+02 : f32
    %17 = vector.broadcast %cst_14 : f32 to vector<128x1xf32>
    %18 = arith.divf %16, %17 : vector<128x1xf32>
    %19 = vector.broadcast %18 : vector<128x1xf32> to vector<128x256xf32>
    %20 = arith.subf %14, %19 : vector<128x256xf32>
    %21 = arith.mulf %20, %20 : vector<128x256xf32>
    %cst_15 = arith.constant dense<0.000000e+00> : vector<128xf32>
    %22 = vector.multi_reduction <add>, %21, %cst_15 [1] : vector<128x256xf32> to vector<128xf32>
    %23 = vector.shape_cast %22 : vector<128xf32> to vector<128x1xf32>
    %cst_16 = arith.constant 2.560000e+02 : f32
    %24 = vector.broadcast %cst_16 : f32 to vector<128x1xf32>
    %25 = arith.divf %23, %24 : vector<128x1xf32>
    %cst_17 = arith.constant 9.99999974E-6 : f32
    %26 = vector.broadcast %cst_17 : f32 to vector<128x1xf32>
    %27 = arith.addf %25, %26 : vector<128x1xf32>
    %28 = math.rsqrt %27 : vector<128x1xf32>
    %29 = vector.broadcast %28 : vector<128x1xf32> to vector<128x256xf32>
    %30 = arith.mulf %20, %29 : vector<128x256xf32>
    %31 = vector.broadcast %2 : vector<1x256xf32> to vector<128x256xf32>
    %32 = arith.mulf %30, %31 : vector<128x256xf32>
    %33 = vector.broadcast %3 : vector<1x256xf32> to vector<128x256xf32>
    %34 = arith.addf %32, %33 : vector<128x256xf32>
    %cst_18 = arith.constant 2.000000e-01 : f32
    %35 = vector.broadcast %cst_18 : f32 to vector<128x256xf32>
    %36 = arith.mulf %35, %34 : vector<128x256xf32>
    %37 = arith.maximumf %34, %36 : vector<128x256xf32>
    %38 = arith.truncf %37 : vector<128x256xf32> to vector<128x256xbf16>
    %c0_19 = arith.constant 0 : index
    %c0_20 = arith.constant 0 : index
    %39 = vector.load %arg3[%c0_19, %c0_20] : memref<256x256xbf16, #tpu.memory_space<vmem>>, vector<256x256xbf16>
    %cst_21 = arith.constant dense<0.000000e+00> : vector<128x256xf32>
    %40 = tpu.matmul %38, %39, %cst_21 {dimension_numbers = #tpu.dot_dimension_numbers<[1], [0], [0], [1], [0, 0, 1, 1], [], []>} : vector<128x256xbf16>, vector<256x256xbf16>, vector<128x256xf32> -> vector<128x256xf32>
    %41 = vector.broadcast %4 : vector<1x256xf32> to vector<128x256xf32>
    %42 = arith.addf %40, %41 : vector<128x256xf32>
    %cst_22 = arith.constant dense<0.000000e+00> : vector<128xf32>
    %43 = vector.multi_reduction <add>, %42, %cst_22 [1] : vector<128x256xf32> to vector<128xf32>
    %44 = vector.shape_cast %43 : vector<128xf32> to vector<128x1xf32>
    %cst_23 = arith.constant 2.560000e+02 : f32
    %45 = vector.broadcast %cst_23 : f32 to vector<128x1xf32>
    %46 = arith.divf %44, %45 : vector<128x1xf32>
    %47 = vector.broadcast %46 : vector<128x1xf32> to vector<128x256xf32>
    %48 = arith.subf %42, %47 : vector<128x256xf32>
    %49 = arith.mulf %48, %48 : vector<128x256xf32>
    %cst_24 = arith.constant dense<0.000000e+00> : vector<128xf32>
    %50 = vector.multi_reduction <add>, %49, %cst_24 [1] : vector<128x256xf32> to vector<128xf32>
    %51 = vector.shape_cast %50 : vector<128xf32> to vector<128x1xf32>
    %cst_25 = arith.constant 2.560000e+02 : f32
    %52 = vector.broadcast %cst_25 : f32 to vector<128x1xf32>
    %53 = arith.divf %51, %52 : vector<128x1xf32>
    %cst_26 = arith.constant 9.99999974E-6 : f32
    %54 = vector.broadcast %cst_26 : f32 to vector<128x1xf32>
    %55 = arith.addf %53, %54 : vector<128x1xf32>
    %56 = math.rsqrt %55 : vector<128x1xf32>
    %57 = vector.broadcast %56 : vector<128x1xf32> to vector<128x256xf32>
    %58 = arith.mulf %48, %57 : vector<128x256xf32>
    %59 = vector.broadcast %5 : vector<1x256xf32> to vector<128x256xf32>
    %60 = arith.mulf %58, %59 : vector<128x256xf32>
    %61 = vector.broadcast %6 : vector<1x256xf32> to vector<128x256xf32>
    %62 = arith.addf %60, %61 : vector<128x256xf32>
    %cst_27 = arith.constant 2.000000e-01 : f32
    %63 = vector.broadcast %cst_27 : f32 to vector<128x256xf32>
    %64 = arith.mulf %63, %62 : vector<128x256xf32>
    %65 = arith.maximumf %62, %64 : vector<128x256xf32>
    %66 = arith.truncf %65 : vector<128x256xf32> to vector<128x256xbf16>
    %c0_28 = arith.constant 0 : index
    %c0_29 = arith.constant 0 : index
    %67 = vector.load %arg4[%c0_28, %c0_29] : memref<256x256xbf16, #tpu.memory_space<vmem>>, vector<256x256xbf16>
    %cst_30 = arith.constant dense<0.000000e+00> : vector<128x256xf32>
    %68 = tpu.matmul %66, %67, %cst_30 {dimension_numbers = #tpu.dot_dimension_numbers<[1], [0], [0], [1], [0, 0, 1, 1], [], []>} : vector<128x256xbf16>, vector<256x256xbf16>, vector<128x256xf32> -> vector<128x256xf32>
    %69 = vector.broadcast %7 : vector<1x256xf32> to vector<128x256xf32>
    %70 = arith.addf %68, %69 : vector<128x256xf32>
    %cst_31 = arith.constant dense<0.000000e+00> : vector<128xf32>
    %71 = vector.multi_reduction <add>, %70, %cst_31 [1] : vector<128x256xf32> to vector<128xf32>
    %72 = vector.shape_cast %71 : vector<128xf32> to vector<128x1xf32>
    %cst_32 = arith.constant 2.560000e+02 : f32
    %73 = vector.broadcast %cst_32 : f32 to vector<128x1xf32>
    %74 = arith.divf %72, %73 : vector<128x1xf32>
    %75 = vector.broadcast %74 : vector<128x1xf32> to vector<128x256xf32>
    %76 = arith.subf %70, %75 : vector<128x256xf32>
    %77 = arith.mulf %76, %76 : vector<128x256xf32>
    %cst_33 = arith.constant dense<0.000000e+00> : vector<128xf32>
    %78 = vector.multi_reduction <add>, %77, %cst_33 [1] : vector<128x256xf32> to vector<128xf32>
    %79 = vector.shape_cast %78 : vector<128xf32> to vector<128x1xf32>
    %cst_34 = arith.constant 2.560000e+02 : f32
    %80 = vector.broadcast %cst_34 : f32 to vector<128x1xf32>
    %81 = arith.divf %79, %80 : vector<128x1xf32>
    %cst_35 = arith.constant 9.99999974E-6 : f32
    %82 = vector.broadcast %cst_35 : f32 to vector<128x1xf32>
    %83 = arith.addf %81, %82 : vector<128x1xf32>
    %84 = math.rsqrt %83 : vector<128x1xf32>
    %85 = vector.broadcast %84 : vector<128x1xf32> to vector<128x256xf32>
    %86 = arith.mulf %76, %85 : vector<128x256xf32>
    %87 = vector.broadcast %8 : vector<1x256xf32> to vector<128x256xf32>
    %88 = arith.mulf %86, %87 : vector<128x256xf32>
    %89 = vector.broadcast %9 : vector<1x256xf32> to vector<128x256xf32>
    %90 = arith.addf %88, %89 : vector<128x256xf32>
    %cst_36 = arith.constant 2.000000e-01 : f32
    %91 = vector.broadcast %cst_36 : f32 to vector<128x256xf32>
    %92 = arith.mulf %91, %90 : vector<128x256xf32>
    %93 = arith.maximumf %90, %92 : vector<128x256xf32>
    %94 = arith.truncf %93 : vector<128x256xf32> to vector<128x256xbf16>
    %c0_37 = arith.constant 0 : index
    %c0_38 = arith.constant 0 : index
    %95 = vector.load %arg5[%c0_37, %c0_38] : memref<256x128xbf16, #tpu.memory_space<vmem>>, vector<256x128xbf16>
    %cst_39 = arith.constant dense<0.000000e+00> : vector<128x128xf32>
    %96 = tpu.matmul %94, %95, %cst_39 {dimension_numbers = #tpu.dot_dimension_numbers<[1], [0], [0], [1], [0, 0, 1, 1], [], []>} : vector<128x256xbf16>, vector<256x128xbf16>, vector<128x128xf32> -> vector<128x128xf32>
    %c0_40 = arith.constant 0 : index
    %c0_41 = arith.constant 0 : index
    %97 = vector.load %arg7[%c0_40, %c0_41] : memref<1x128xf32, #tpu.memory_space<vmem>>, vector<1x128xf32>
    %98 = vector.broadcast %97 : vector<1x128xf32> to vector<128x128xf32>
    %99 = arith.addf %96, %98 : vector<128x128xf32>
    %100 = arith.addf %99, %0 : vector<128x128xf32>
    %c0_42 = arith.constant 0 : index
    %c0_43 = arith.constant 0 : index
    %101 = vector.load %arg8[%c0_42, %c0_43] : memref<128x128xf32, #tpu.memory_space<vmem>>, vector<128x128xf32>
    tpu.vector_store %arg8[%c0_42, %c0_43], %100 {strides = array<i32>} : memref<128x128xf32, #tpu.memory_space<vmem>>, vector<128x128xf32>,
    return
  }
  func.func @transform_0(%arg0: i32) -> (i32, i32) {
    %c0_i32 = arith.constant 0 : i32
    %c0_i32_0 = arith.constant 0 : i32
    return %arg0, %c0_i32 : i32, i32
  }
  func.func @transform_1(%arg0: i32) -> (i32, i32) {
    %c0_i32 = arith.constant 0 : i32
    %c0_i32_0 = arith.constant 0 : i32
    %c0_i32_1 = arith.constant 0 : i32
    return %c0_i32, %c0_i32_0 : i32, i32
  }
  func.func @transform_2(%arg0: i32) -> (i32, i32) {
    %c0_i32 = arith.constant 0 : i32
    %c0_i32_0 = arith.constant 0 : i32
    %c0_i32_1 = arith.constant 0 : i32
    return %c0_i32, %c0_i32_0 : i32, i32
  }
  func.func @transform_3(%arg0: i32) -> (i32, i32) {
    %c0_i32 = arith.constant 0 : i32
    %c0_i32_0 = arith.constant 0 : i32
    %c0_i32_1 = arith.constant 0 : i32
    return %c0_i32, %c0_i32_0 : i32, i32
  }
  func.func @transform_4(%arg0: i32) -> (i32, i32) {
    %c0_i32 = arith.constant 0 : i32
    %c0_i32_0 = arith.constant 0 : i32
    %c0_i32_1 = arith.constant 0 : i32
    return %c0_i32, %c0_i32_0 : i32, i32
  }
  func.func @transform_5(%arg0: i32) -> (i32, i32) {
    %c0_i32 = arith.constant 0 : i32
    %c0_i32_0 = arith.constant 0 : i32
    %c0_i32_1 = arith.constant 0 : i32
    return %c0_i32, %c0_i32_0 : i32, i32
  }
  func.func @transform_6(%arg0: i32) -> (i32, i32) {
    %c0_i32 = arith.constant 0 : i32
    %c0_i32_0 = arith.constant 0 : i32
    %c0_i32_1 = arith.constant 0 : i32
    return %c0_i32, %c0_i32_0 : i32, i32
  }
  func.func @transform_7(%arg0: i32) -> (i32, i32) {
    %c0_i32 = arith.constant 0 : i32
    %c0_i32_0 = arith.constant 0 : i32
    return %arg0, %c0_i32 : i32, i32
  }
}

</mosaic_0001>

<llo_original>
// kernel: tpu_custom_call.1
$region0: #{tpu_custom_call.1}
  #allocation0 [shape = 'u32[]', space=smem, size = 0x4, offset = 0x4, fixed_abs, tag = 'smem constant byte address 0x4 - core index']
  #allocation1 [shape = 'u32[144,128]{1,0:T(1,128)}', space=vmem, size = 0x12000, scoped, tag = 'internal scratch']
  %s0 = inlined_call_operand.hbm [shape: f32[256,128], index: 0, kind: input, shape index: {}]
  %s1 = inlined_call_operand.hbm [shape: bf16[128,256], index: 1, kind: input, shape index: {}]
  %s2 = inlined_call_operand.hbm [shape: bf16[256,256], index: 2, kind: input, shape index: {}]
  %s3 = inlined_call_operand.hbm [shape: bf16[256,256], index: 3, kind: input, shape index: {}]
  %s4 = inlined_call_operand.hbm [shape: bf16[256,128], index: 4, kind: input, shape index: {}]
  %s5 = inlined_call_operand.hbm [shape: f32[9,256], index: 5, kind: input, shape index: {}]
  %s6 = inlined_call_operand.vmem [shape: f32[1,128], index: 6, kind: input, shape index: {}]
  %s7 = inlined_call_operand.hbm [shape: f32[256,128], index: 7, kind: output, shape index: {}]
  %s8 = sld [smem:[#allocation0]]
  $region85: #{tpu_custom_call.1} parent=0
    _
  %s10 = ssub.s32 1, %s8
  %s11 = scalar_select 0, %s10, %s8
  $region1: #{tpu_custom_call.1} parent=0
    #allocation2 [shape = 'u8[131072]{0}', space=vmem, size = 0x20000, scoped, tag = 'input window, operand 0']
    #allocation3 [shape = 's32[2]{0}', space=sflag, size = 0x8, scoped, tag = 'scoped memory for tpu_custom_call.1']
    #allocation4 [shape = 's32[2]{0}', space=sflag, size = 0x8, scoped, tag = 'scoped memory for tpu_custom_call.1']
    #allocation5 [shape = 'u8[65536]{0}', space=vmem, size = 0x10000, scoped, tag = 'input window, operand 1, single buffered']
    #allocation6 [shape = 's32[1]{0}', space=sflag, size = 0x4, scoped, tag = 'scoped memory for tpu_custom_call.1']
    #allocation7 [shape = 'u8[131072]{0}', space=vmem, size = 0x20000, scoped, tag = 'input window, operand 2, single buffered']
    #allocation8 [shape = 'u8[131072]{0}', space=vmem, size = 0x20000, scoped, tag = 'input window, operand 3, single buffered']
    #allocation9 [shape = 's32[1]{0}', space=sflag, size = 0x4, scoped, tag = 'scoped memory for tpu_custom_call.1']
    #allocation10 [shape = 'u8[65536]{0}', space=vmem, size = 0x10000, scoped, tag = 'input window, operand 4, single buffered']
    #allocation11 [shape = 'u8[16384]{0}', space=vmem, size = 0x4000, scoped, tag = 'input window, operand 5, single buffered']
    #allocation12 [shape = 's32[1]{0}', space=sflag, size = 0x4, scoped, tag = 'scoped memory for tpu_custom_call.1']
    #allocation13 [shape = 'u8[131072]{0}', space=vmem, size = 0x20000, scoped, tag = 'output window, operand 0']
    %12 = vsyncpa [#allocation3], 0
    %s13 = scalar_lea.sflag [#allocation3], 1
    %14 = vsyncpa %s13, 0
    %15 = vsyncpa [#allocation6], 0
    %16 = vsyncpa [#allocation9], 0
    %17 = vsyncpa [#allocation12], 0
    %18 = vsyncpa [#allocation4], 0
    %s19 = scalar_lea.sflag [#allocation4], 1
    %20 = vsyncpa %s19, 0
    loop: start=0, step=1, limit=4
    $region2: #{tpu_custom_call.1} parent=1 // loop_pre_header
      _
    $region3: #{tpu_custom_call.1} parent=1 // loop_header
      %s22 = sphi 0, %s26
      %p23 = scmp.ge.s32.totalorder %s22, 4
      %s32 = sphi 0, %s34
      %s35 = sphi 0, %s32
      %s36 = sphi 0, %s35
      %s52 = sphi 0, %s36
      %s56 = sphi 0, %s56
      %s58 = sphi 0, %s56
      %s59 = sphi 0, %s58
      %s73 = sphi 0, %s59
      %s77 = sphi 0, %s77
      %s79 = sphi 0, %s77
      %s80 = sphi 0, %s79
      %s94 = sphi 0, %s80
      %s98 = sphi 0, %s98
      %s100 = sphi 0, %s98
      %s101 = sphi 0, %s100
      %s115 = sphi 0, %s101
      %s119 = sphi 0, %s119
      %s121 = sphi 0, %s119
      %s122 = sphi 0, %s121
      %s136 = sphi 0, %s122
      %s140 = sphi 0, %s140
      %s142 = sphi 0, %s140
      %s143 = sphi 0, %s142
      %s157 = sphi 0, %s143
      %s161 = sphi 0, %s161
      %s163 = sphi 0, %s161
      %s164 = sphi 0, %s163
      %s178 = sphi 0, %s164
      %s184 = sphi 0, %s186
      %s187 = sphi 0, %s184
      %s188 = sphi 0, %s187
      %s204 = sphi 0, %s188
    $region4: #{tpu_custom_call.1} parent=1 // loop_header_branch
      %25 = sbr.rel (%p23) target = $region8
    $region5: #{tpu_custom_call.1} parent=1 // loop_body
      %s27 = ssub.s32 %s22, 1
      %s28 = ssub.s32 %s22, 2
      %s29 = sadd.s32 %s22, 1
      %s30 = ssub.s32 %s22, %s29
      %p31 = scmp.eq.s32.totalorder %s30, 0
      %s33 = sadd.s32 %s32, 1
      %s34 = scalar_select %p31, %s32, %s33
      %p37 = pneg %p31
      %p38 = scmp.eq.s32.totalorder %s22, 1
      %p39 = por %p37, %p38
      %p40 = scmp.ne.s32.totalorder %s32, %s35
      %p41 = scmp.eq.s32.totalorder %s22, 0
      %p42 = por %p40, %p41
      %p43 = scmp.ne.s32.totalorder %s32, %s35
      %p44 = scmp.eq.s32.totalorder %s27, 1
      %p45 = por %p43, %p44
      %p46 = scmp.ne.s32.totalorder %s35, %s36
      %p47 = scmp.eq.s32.totalorder %s27, 0
      %p48 = por %p46, %p47
      %p49 = scmp.ne.s32.totalorder %s35, %s36
      %p50 = scmp.eq.s32.totalorder %s28, 1
      %p51 = por %p49, %p50
      %p53 = scmp.ne.s32.totalorder %s36, %s52
      %p54 = scmp.eq.s32.totalorder %s28, 0
      %p55 = por %p53, %p54
      %s57 = sadd.s32 %s56, 1
      %p60 = scmp.eq.s32.totalorder %s22, 1
      %p61 = scmp.ne.s32.totalorder %s56, %s58
      %p62 = scmp.eq.s32.totalorder %s22, 0
      %p63 = por %p61, %p62
      %p64 = scmp.ne.s32.totalorder %s56, %s58
      %p65 = scmp.eq.s32.totalorder %s27, 1
      %p66 = por %p64, %p65
      %p67 = scmp.ne.s32.totalorder %s58, %s59
      %p68 = scmp.eq.s32.totalorder %s27, 0
      %p69 = por %p67, %p68
      %p70 = scmp.ne.s32.totalorder %s58, %s59
      %p71 = scmp.eq.s32.totalorder %s28, 1
      %p72 = por %p70, %p71
      %p74 = scmp.ne.s32.totalorder %s59, %s73
      %p75 = scmp.eq.s32.totalorder %s28, 0
      %p76 = por %p74, %p75
      %s78 = sadd.s32 %s77, 1
      %p81 = scmp.eq.s32.totalorder %s22, 1
      %p82 = scmp.ne.s32.totalorder %s77, %s79
      %p83 = scmp.eq.s32.totalorder %s22, 0
      %p84 = por %p82, %p83
      %p85 = scmp.ne.s32.totalorder %s77, %s79
      %p86 = scmp.eq.s32.totalorder %s27, 1
      %p87 = por %p85, %p86
      %p88 = scmp.ne.s32.totalorder %s79, %s80
      %p89 = scmp.eq.s32.totalorder %s27, 0
      %p90 = por %p88, %p89
      %p91 = scmp.ne.s32.totalorder %s79, %s80
      %p92 = scmp.eq.s32.totalorder %s28, 1
      %p93 = por %p91, %p92
      %p95 = scmp.ne.s32.totalorder %s80, %s94
      %p96 = scmp.eq.s32.totalorder %s28, 0
      %p97 = por %p95, %p96
      %s99 = sadd.s32 %s98, 1
      %p102 = scmp.eq.s32.totalorder %s22, 1
      %p103 = scmp.ne.s32.totalorder %s98, %s100
      %p104 = scmp.eq.s32.totalorder %s22, 0
      %p105 = por %p103, %p104
      %p106 = scmp.ne.s32.totalorder %s98, %s100
      %p107 = scmp.eq.s32.totalorder %s27, 1
      %p108 = por %p106, %p107
      %p109 = scmp.ne.s32.totalorder %s100, %s101
      %p110 = scmp.eq.s32.totalorder %s27, 0
      %p111 = por %p109, %p110
      %p112 = scmp.ne.s32.totalorder %s100, %s101
      %p113 = scmp.eq.s32.totalorder %s28, 1
      %p114 = por %p112, %p113
      %p116 = scmp.ne.s32.totalorder %s101, %s115
      %p117 = scmp.eq.s32.totalorder %s28, 0
      %p118 = por %p116, %p117
      %s120 = sadd.s32 %s119, 1
      %p123 = scmp.eq.s32.totalorder %s22, 1
      %p124 = scmp.ne.s32.totalorder %s119, %s121
      %p125 = scmp.eq.s32.totalorder %s22, 0
      %p126 = por %p124, %p125
      %p127 = scmp.ne.s32.totalorder %s119, %s121
      %p128 = scmp.eq.s32.totalorder %s27, 1
      %p129 = por %p127, %p128
      %p130 = scmp.ne.s32.totalorder %s121, %s122
      %p131 = scmp.eq.s32.totalorder %s27, 0
      %p132 = por %p130, %p131
      %p133 = scmp.ne.s32.totalorder %s121, %s122
      %p134 = scmp.eq.s32.totalorder %s28, 1
      %p135 = por %p133, %p134
      %p137 = scmp.ne.s32.totalorder %s122, %s136
      %p138 = scmp.eq.s32.totalorder %s28, 0
      %p139 = por %p137, %p138
      %s141 = sadd.s32 %s140, 1
      %p144 = scmp.eq.s32.totalorder %s22, 1
      %p145 = scmp.ne.s32.totalorder %s140, %s142
      %p146 = scmp.eq.s32.totalorder %s22, 0
      %p147 = por %p145, %p146
      %p148 = scmp.ne.s32.totalorder %s140, %s142
      %p149 = scmp.eq.s32.totalorder %s27, 1
      %p150 = por %p148, %p149
      %p151 = scmp.ne.s32.totalorder %s142, %s143
      %p152 = scmp.eq.s32.totalorder %s27, 0
      %p153 = por %p151, %p152
      %p154 = scmp.ne.s32.totalorder %s142, %s143
      %p155 = scmp.eq.s32.totalorder %s28, 1
      %p156 = por %p154, %p155
      %p158 = scmp.ne.s32.totalorder %s143, %s157
      %p159 = scmp.eq.s32.totalorder %s28, 0
      %p160 = por %p158, %p159
      %s162 = sadd.s32 %s161, 1
      %p165 = scmp.eq.s32.totalorder %s22, 1
      %p166 = scmp.ne.s32.totalorder %s161, %s163
      %p167 = scmp.eq.s32.totalorder %s22, 0
      %p168 = por %p166, %p167
      %p169 = scmp.ne.s32.totalorder %s161, %s163
      %p170 = scmp.eq.s32.totalorder %s27, 1
      %p171 = por %p169, %p170
      %p172 = scmp.ne.s32.totalorder %s163, %s164
      %p173 = scmp.eq.s32.totalorder %s27, 0
      %p174 = por %p172, %p173
      %p175 = scmp.ne.s32.totalorder %s163, %s164
      %p176 = scmp.eq.s32.totalorder %s28, 1
      %p177 = por %p175, %p176
      %p179 = scmp.ne.s32.totalorder %s164, %s178
      %p180 = scmp.eq.s32.totalorder %s28, 0
      %p181 = por %p179, %p180
      %s182 = ssub.s32 %s22, %s29
      %p183 = scmp.eq.s32.totalorder %s182, 0
      %s185 = sadd.s32 %s184, 1
      %s186 = scalar_select %p183, %s184, %s185
      %p189 = pneg %p183
      %p190 = scmp.eq.s32.totalorder %s22, 1
      %p191 = por %p189, %p190
      %p192 = scmp.ne.s32.totalorder %s184, %s187
      %p193 = scmp.eq.s32.totalorder %s22, 0
      %p194 = por %p192, %p193
      %p195 = scmp.ne.s32.totalorder %s184, %s187
      %p196 = scmp.eq.s32.totalorder %s27, 1
      %p197 = por %p195, %p196
      %p198 = scmp.ne.s32.totalorder %s187, %s188
      %p199 = scmp.eq.s32.totalorder %s27, 0
      %p200 = por %p198, %p199
      %p201 = scmp.ne.s32.totalorder %s187, %s188
      %p202 = scmp.eq.s32.totalorder %s28, 1
      %p203 = por %p201, %p202
      %p205 = scmp.ne.s32.totalorder %s188, %s204
      %p206 = scmp.eq.s32.totalorder %s28, 0
      %p207 = por %p205, %p206
      %p208 = scmp.le.s32.totalorder 1, %s22
      %p209 = scmp.lt.s32.totalorder %s22, 3
      %p210 = pnand %p208, %p209
      %p211 = pneg %p210
      // Predicated region
      $region9: #{tpu_custom_call.1} parent=5 // pred_check
        _
      $region10: #{tpu_custom_call.1} parent=5 // pred_check_branch
        %213 = sbr.rel (%p210) target = $region12
      $region11: #{tpu_custom_call.1} parent=5 // pred_region
        %s214 = ssub.s32 %s22, 1
        // Predicated region
        $region13: #{tpu_custom_call.1} parent=11 // pred_check
          %p215 = pneg %p69
        $region14: #{tpu_custom_call.1} parent=11 // pred_check_branch
          %217 = sbr.rel (%p215) target = $region16
        $region15: #{tpu_custom_call.1} parent=11 // pred_region
          %s219 = ssub.s32 2048, 2048
          %220 = vsyncadd [#allocation6], %s219
          %s221 = sshll.u32 [#allocation5], 4
          %s222 = int_to_ptr.vmem [resolvable:$true] %s221
          %227 = dma.hbm_to_vmem [thread:$0]  %s1, 2048, %s222, [#allocation6], 128, 128, 8
        $region16: #{tpu_custom_call.1} parent=11 // pred_fallthru
          _
        // Predicated region
        $region17: #{tpu_custom_call.1} parent=11 // pred_check
          %p228 = pneg %p90
        $region18: #{tpu_custom_call.1} parent=11 // pred_check_branch
          %230 = sbr.rel (%p228) target = $region20
        $region19: #{tpu_custom_call.1} parent=11 // pred_region
          %s232 = ssub.s32 4096, 4096
          %233 = vsyncadd [#allocation6], %s232
          %s234 = sshll.u32 [#allocation7], 4
          %s235 = int_to_ptr.vmem [resolvable:$true] %s234
          %240 = dma.hbm_to_vmem [thread:$0]  %s2, 4096, %s235, [#allocation6], 128, 128, 8
        $region20: #{tpu_custom_call.1} parent=11 // pred_fallthru
          _
        // Predicated region
        $region21: #{tpu_custom_call.1} parent=11 // pred_check
          %p241 = pneg %p111
        $region22: #{tpu_custom_call.1} parent=11 // pred_check_branch
          %243 = sbr.rel (%p241) target = $region24
        $region23: #{tpu_custom_call.1} parent=11 // pred_region
          %s245 = ssub.s32 4096, 4096
          %246 = vsyncadd [#allocation9], %s245
          %s247 = sshll.u32 [#allocation8], 4
          %s248 = int_to_ptr.vmem [resolvable:$true] %s247
          %253 = dma.hbm_to_vmem [thread:$0]  %s3, 4096, %s248, [#allocation9], 128, 128, 8
        $region24: #{tpu_custom_call.1} parent=11 // pred_fallthru
          _
        // Predicated region
        $region25: #{tpu_custom_call.1} parent=11 // pred_check
          %p254 = pneg %p132
        $region26: #{tpu_custom_call.1} parent=11 // pred_check_branch
          %256 = sbr.rel (%p254) target = $region28
        $region27: #{tpu_custom_call.1} parent=11 // pred_region
          %s258 = ssub.s32 2048, 2048
          %259 = vsyncadd [#allocation9], %s258
          %s260 = sshll.u32 [#allocation10], 4
          %s261 = int_to_ptr.vmem [resolvable:$true] %s260
          %266 = dma.hbm_to_vmem [thread:$0]  %s4, 2048, %s261, [#allocation9], 64, 64, 4
        $region28: #{tpu_custom_call.1} parent=11 // pred_fallthru
          _
        // Predicated region
        $region29: #{tpu_custom_call.1} parent=11 // pred_check
          %p267 = pneg %p153
        $region30: #{tpu_custom_call.1} parent=11 // pred_check_branch
          %269 = sbr.rel (%p267) target = $region32
        $region31: #{tpu_custom_call.1} parent=11 // pred_region
          %s271 = ssub.s32 512, 512
          %272 = vsyncadd [#allocation12], %s271
          %s273 = sshll.u32 [#allocation11], 4
          %s274 = int_to_ptr.vmem [resolvable:$true] %s273
          %279 = dma.hbm_to_vmem [thread:$0]  %s5, 512, %s274, [#allocation12], 256, 256, 16
        $region32: #{tpu_custom_call.1} parent=11 // pred_fallthru
          _
        // Predicated region
        $region33: #{tpu_custom_call.1} parent=11 // pred_check
          %p280 = pneg %p174
        $region34: #{tpu_custom_call.1} parent=11 // pred_check_branch
          %282 = sbr.rel (%p280) target = $region36
        $region35: #{tpu_custom_call.1} parent=11 // pred_region
          _
        $region36: #{tpu_custom_call.1} parent=11 // pred_fallthru
          _
      $region12: #{tpu_custom_call.1} parent=5 // pred_fallthru
        _
      %p283 = scmp.lt.s32.totalorder %s22, 2
      // Predicated region
      $region37: #{tpu_custom_call.1} parent=5 // pred_check
        %p284 = pneg %p283
      $region38: #{tpu_custom_call.1} parent=5 // pred_check_branch
        %286 = sbr.rel (%p284) target = $region40
      $region39: #{tpu_custom_call.1} parent=5 // pred_region
        // Predicated region
        $region41: #{tpu_custom_call.1} parent=39 // pred_check
          %p287 = pneg %p42
        $region42: #{tpu_custom_call.1} parent=39 // pred_check_branch
          %289 = sbr.rel (%p287) target = $region44
        $region43: #{tpu_custom_call.1} parent=39 // pred_region
          %s290 = sand.u32 %s32, 1
          %s291 = scalar_lea.sflag [#allocation3], %s290
          %s292 = sand.u32 %s32, 1
          %s293 = smul.addr %s292, 128
          %s294 = scalar_lea.vmem [#allocation2], %s293
          %s295 = smul.u32 16, %s22
          %s297 = ssub.s32 2048, 2048
          %298 = vsyncadd %s291, %s297
          %s299 = smul.addr %s295, 128
          %s300 = scalar_lea.hbm %s0, %s299
          %s301 = sshll.u32 %s294, 4
          %s302 = int_to_ptr.vmem [resolvable:$true] %s301
          %307 = dma.hbm_to_vmem [thread:$0]  %s300, 2048, %s302, %s291, 128, 128, 8
        $region44: #{tpu_custom_call.1} parent=39 // pred_fallthru
          _
      $region40: #{tpu_custom_call.1} parent=5 // pred_fallthru
        _
      %p308 = scmp.le.s32.totalorder 1, %s22
      %p309 = scmp.lt.s32.totalorder %s22, 3
      %p310 = pnand %p308, %p309
      %p311 = pneg %p310
      // Predicated region
      $region45: #{tpu_custom_call.1} parent=5 // pred_check
        _
      $region46: #{tpu_custom_call.1} parent=5 // pred_check_branch
        %313 = sbr.rel (%p310) target = $region48
      $region47: #{tpu_custom_call.1} parent=5 // pred_region
        %s314 = ssub.s32 %s22, 1
        %s315 = sand.u32 %s35, 1
        %s316 = scalar_lea.sflag [#allocation3], %s315
        %s317 = sand.u32 %s35, 1
        %s318 = smul.addr %s317, 128
        %s319 = scalar_lea.vmem [#allocation2], %s318
        // Predicated region
        $region49: #{tpu_custom_call.1} parent=47 // pred_check
          %p320 = pneg %p48
        $region50: #{tpu_custom_call.1} parent=47 // pred_check_branch
          %322 = sbr.rel (%p320) target = $region52
        $region51: #{tpu_custom_call.1} parent=47 // pred_region
          %323 = dma.done %s316, 2048
        $region52: #{tpu_custom_call.1} parent=47 // pred_fallthru
          _
        // Predicated region
        $region53: #{tpu_custom_call.1} parent=47 // pred_check
          %p324 = pneg %p69
        $region54: #{tpu_custom_call.1} parent=47 // pred_check_branch
          %326 = sbr.rel (%p324) target = $region56
        $region55: #{tpu_custom_call.1} parent=47 // pred_region
          %327 = dma.done [#allocation6], 2048
        $region56: #{tpu_custom_call.1} parent=47 // pred_fallthru
          _
        // Predicated region
        $region57: #{tpu_custom_call.1} parent=47 // pred_check
          %p328 = pneg %p90
        $region58: #{tpu_custom_call.1} parent=47 // pred_check_branch
          %330 = sbr.rel (%p328) target = $region60
        $region59: #{tpu_custom_call.1} parent=47 // pred_region
          %331 = dma.done [#allocation6], 4096
        $region60: #{tpu_custom_call.1} parent=47 // pred_fallthru
          _
        // Predicated region
        $region61: #{tpu_custom_call.1} parent=47 // pred_check
          %p332 = pneg %p111
        $region62: #{tpu_custom_call.1} parent=47 // pred_check_branch
          %334 = sbr.rel (%p332) target = $region64
        $region63: #{tpu_custom_call.1} parent=47 // pred_region
          %335 = dma.done [#allocation9], 4096
        $region64: #{tpu_custom_call.1} parent=47 // pred_fallthru
          _
        // Predicated region
        $region65: #{tpu_custom_call.1} parent=47 // pred_check
          %p336 = pneg %p132
        $region66: #{tpu_custom_call.1} parent=47 // pred_check_branch
          %338 = sbr.rel (%p336) target = $region68
        $region67: #{tpu_custom_call.1} parent=47 // pred_region
          %339 = dma.done [#allocation9], 2048
        $region68: #{tpu_custom_call.1} parent=47 // pred_fallthru
          _
        // Predicated region
        $region69: #{tpu_custom_call.1} parent=47 // pred_check
          %p340 = pneg %p153
        $region70: #{tpu_custom_call.1} parent=47 // pred_check_branch
          %342 = sbr.rel (%p340) target = $region72
        $region71: #{tpu_custom_call.1} parent=47 // pred_region
          %343 = dma.done [#allocation12], 512
        $region72: #{tpu_custom_call.1} parent=47 // pred_fallthru
          _
        %s344 = sand.u32 %s35, 1
        %s345 = scalar_lea.sflag [#allocation3], %s344
        %s346 = sand.u32 %s35, 1
        %s347 = smul.addr %s346, 128
        %s348 = scalar_lea.vmem [#allocation2], %s347
        %p349 = pneg %p48
        %p350 = pneg %p45
        %p351 = pneg %p69
        %p352 = pneg %p66
        %p353 = pneg %p90
        %p354 = pneg %p87
        %p355 = pneg %p111
        %p356 = pneg %p108
        %p357 = pneg %p132
        %p358 = pneg %p129
        %p359 = pneg %p153
        %p360 = pneg %p150
        %p361 = pneg %p174
        %p362 = pneg %p171
        %p363 = pneg %p200
        %p364 = pneg %p197
        %s365 = sand.u32 %s187, 1
        %s366 = scalar_lea.sflag [#allocation4], %s365
        %s367 = sand.u32 %s187, 1
        %s368 = smul.addr %s367, 128
        %s369 = scalar_lea.vmem [#allocation13], %s368
        %s370 = smul.u32 16, %s27
        %s371 = smul.u32 16, %s27
        %v373 = vld [vmem:[%s319] sm:$0xff]
        %v374 = vld [vmem:[%s319 + $0x8] sm:$0xff]
        %v375 = vld [vmem:[%s319 + $0x10] sm:$0xff]
        %v376 = vld [vmem:[%s319 + $0x18] sm:$0xff]
        %v377 = vld [vmem:[%s319 + $0x20] sm:$0xff]
        %v378 = vld [vmem:[%s319 + $0x28] sm:$0xff]
        %v379 = vld [vmem:[%s319 + $0x30] sm:$0xff]
        %v380 = vld [vmem:[%s319 + $0x38] sm:$0xff]
        %v381 = vld [vmem:[%s319 + $0x40] sm:$0xff]
        %v382 = vld [vmem:[%s319 + $0x48] sm:$0xff]
        %v383 = vld [vmem:[%s319 + $0x50] sm:$0xff]
        %v384 = vld [vmem:[%s319 + $0x58] sm:$0xff]
        %v385 = vld [vmem:[%s319 + $0x60] sm:$0xff]
        %v386 = vld [vmem:[%s319 + $0x68] sm:$0xff]
        %v387 = vld [vmem:[%s319 + $0x70] sm:$0xff]
        %v388 = vld [vmem:[%s319 + $0x78] sm:$0xff]
        %v389 = vld [vmem:[#allocation11] ss:$8 sm:$0x3]
        %s390 = scalar_lea.vmem [#allocation11], 1
        %v391 = vld [vmem:[%s390] ss:$8 sm:$0x3]
        %s392 = scalar_lea.vmem [#allocation11], 2
        %v393 = vld [vmem:[%s392] ss:$8 sm:$0x3]
        %s394 = scalar_lea.vmem [#allocation11], 3
        %v395 = vld [vmem:[%s394] ss:$8 sm:$0x3]
        %s396 = scalar_lea.vmem [#allocation11], 4
        %v397 = vld [vmem:[%s396] ss:$8 sm:$0x3]
        %s398 = scalar_lea.vmem [#allocation11], 5
        %v399 = vld [vmem:[%s398] ss:$8 sm:$0x3]
        %s400 = scalar_lea.vmem [#allocation11], 6
        %v401 = vld [vmem:[%s400] ss:$8 sm:$0x3]
        %s402 = scalar_lea.vmem [#allocation11], 7
        %v403 = vld [vmem:[%s402] ss:$8 sm:$0x3]
        %s404 = scalar_lea.vmem [#allocation11], 16
        %v405 = vld [vmem:[%s404] ss:$8 sm:$0x3]
        %v406 = vpack.c.bf16 %v374, %v373
        %v407 = vpack.c.bf16 %v376, %v375
        %v408 = vpack.c.bf16 %v378, %v377
        %v409 = vpack.c.bf16 %v380, %v379
        %v410 = vpack.c.bf16 %v382, %v381
        %v411 = vpack.c.bf16 %v384, %v383
        %v412 = vpack.c.bf16 %v386, %v385
        %v413 = vpack.c.bf16 %v388, %v387
        %v414 = vld [vmem:[#allocation5] sm:$0xff]
        %v415 = vld [vmem:[#allocation5 + $0x8] sm:$0xff]
        %v416 = vld [vmem:[#allocation5 + $0x10] sm:$0xff]
        %v417 = vld [vmem:[#allocation5 + $0x18] sm:$0xff]
        %v418 = vld [vmem:[#allocation5 + $0x20] sm:$0xff]
        %v419 = vld [vmem:[#allocation5 + $0x28] sm:$0xff]
        %v420 = vld [vmem:[#allocation5 + $0x30] sm:$0xff]
        %v421 = vld [vmem:[#allocation5 + $0x38] sm:$0xff]
        %v422 = vld [vmem:[#allocation5 + $0x40] sm:$0xff]
        %v423 = vld [vmem:[#allocation5 + $0x48] sm:$0xff]
        %v424 = vld [vmem:[#allocation5 + $0x50] sm:$0xff]
        %v425 = vld [vmem:[#allocation5 + $0x58] sm:$0xff]
        %v426 = vld [vmem:[#allocation5 + $0x60] sm:$0xff]
        %v427 = vld [vmem:[#allocation5 + $0x68] sm:$0xff]
        %v428 = vld [vmem:[#allocation5 + $0x70] sm:$0xff]
        %v429 = vld [vmem:[#allocation5 + $0x78] sm:$0xff]
        %v431 = vlaneseq
        %v432 = vshrl.u32 %v431, 7
        %v433 = vsub.s32 0, %v432
        %v434 = vrot.slane %v389, %v433
        %v435 = vlaneseq
        %v436 = vshrl.u32 %v435, 7
        %v437 = vsub.s32 1, %v436
        %v438 = vrot.slane %v389, %v437
        %v457 = vunpack.c.l.b16 %v414
        %v458 = vunpack.c.h.b16 %v414
        %v459 = vunpack.c.l.b16 %v415
        %v460 = vunpack.c.h.b16 %v415
        %v461 = vunpack.c.l.b16 %v416
        %v462 = vunpack.c.h.b16 %v416
        %v463 = vunpack.c.l.b16 %v417
        %v464 = vunpack.c.h.b16 %v417
        %v465 = vunpack.c.l.b16 %v418
        %v466 = vunpack.c.h.b16 %v418
        %v467 = vunpack.c.l.b16 %v419
        %v468 = vunpack.c.h.b16 %v419
        %v469 = vunpack.c.l.b16 %v420
        %v470 = vunpack.c.h.b16 %v420
        %v471 = vunpack.c.l.b16 %v421
        %v472 = vunpack.c.h.b16 %v421
        %v473 = vunpack.c.l.b16 %v422
        %v474 = vunpack.c.h.b16 %v422
        %v475 = vunpack.c.l.b16 %v423
        %v476 = vunpack.c.h.b16 %v423
        %v477 = vunpack.c.l.b16 %v424
        %v478 = vunpack.c.h.b16 %v424
        %v479 = vunpack.c.l.b16 %v425
        %v480 = vunpack.c.h.b16 %v425
        %v481 = vunpack.c.l.b16 %v426
        %v482 = vunpack.c.h.b16 %v426
        %v483 = vunpack.c.l.b16 %v427
        %v484 = vunpack.c.h.b16 %v427
        %v485 = vunpack.c.l.b16 %v428
        %v486 = vunpack.c.h.b16 %v428
        %v487 = vunpack.c.l.b16 %v429
        %v488 = vunpack.c.h.b16 %v429
        %v489 = vpack.c.b16 %v459, %v457
        %v490 = vpack.c.b16 %v460, %v458
        %v491 = vpack.c.b16 %v463, %v461
        %v492 = vpack.c.b16 %v464, %v462
        %v493 = vpack.c.b16 %v467, %v465
        %v494 = vpack.c.b16 %v468, %v466
        %v495 = vpack.c.b16 %v471, %v469
        %v496 = vpack.c.b16 %v472, %v470
        %v497 = vpack.c.b16 %v475, %v473
        %v498 = vpack.c.b16 %v476, %v474
        %v499 = vpack.c.b16 %v479, %v477
        %v500 = vpack.c.b16 %v480, %v478
        %v501 = vpack.c.b16 %v483, %v481
        %v502 = vpack.c.b16 %v484, %v482
        %v503 = vpack.c.b16 %v487, %v485
        %v504 = vpack.c.b16 %v488, %v486
        %521 = vmatprep.subr.bf16.mxu0 %v490
        %522 = vmatpush1.bf16.msra.mxu0 %v489
        %523 = vmatprep.subr.bf16.mxu0 %v492
        %524 = vmatpush1.bf16.msra.mxu0 %v491
        %525 = vmatprep.subr.bf16.mxu0 %v494
        %526 = vmatpush1.bf16.msra.mxu0 %v493
        %527 = vmatprep.subr.bf16.mxu0 %v496
        %528 = vmatpush1.bf16.msra.mxu0 %v495
        %529 = vmatprep.subr.bf16.mxu0 %v498
        %530 = vmatpush1.bf16.msra.mxu0 %v497
        %531 = vmatprep.subr.bf16.mxu0 %v500
        %532 = vmatpush1.bf16.msra.mxu0 %v499
        %533 = vmatprep.subr.bf16.mxu0 %v502
        %534 = vmatpush1.bf16.msra.mxu0 %v501
        %535 = vmatprep.subr.bf16.mxu0 %v504
        %536 = vmatpush1.bf16.msra.mxu0 %v503
        %537 = vmatprep.subr.bf16.mxu0 0
        %538 = vmatpush1.bf16.msra.mxu0 0
        %539 = vmatprep.subr.bf16.mxu0 0
        %540 = vmatpush1.bf16.msra.mxu0 0
        %541 = vmatprep.subr.bf16.mxu0 0
        %542 = vmatpush1.bf16.msra.mxu0 0
        %543 = vmatprep.subr.bf16.mxu0 0
        %544 = vmatpush1.bf16.msra.mxu0 0
        %545 = vmatprep.subr.bf16.mxu0 0
        %546 = vmatpush1.bf16.msra.mxu0 0
        %547 = vmatprep.subr.bf16.mxu0 0
        %548 = vmatpush1.bf16.msra.mxu0 0
        %549 = vmatprep.subr.bf16.mxu0 0
        %550 = vmatpush1.bf16.msra.mxu0 0
        %551 = vmatprep.subr.bf16.mxu0 0
        %552 = vmatpush1.bf16.msra.mxu0 0
        %553 = vmatprep.mubr.bf16.mxu0 0
        %554 = vmatmul.mubr.bf16.gmra.mrb[0].mxu0 %v406
        %v555 = vpop.f32.mrb[0].mxu0
        %v556 = vadd.f32 %v434, %v555
        %v557 = vpop.f32.mrb[0].mxu0
        %v558 = vadd.f32 %v438, %v557
        %v559 = vpop.f32.mrb[0].mxu0
        %v560 = vadd.f32 %v434, %v559
        %v561 = vpop.f32.mrb[0].mxu0
        %v562 = vadd.f32 %v438, %v561
        %563 = vmatprep.mubr.bf16.mxu0 0
        %564 = vmatmul.mubr.bf16.gmra.mrb[0].mxu0 %v407
        %v565 = vpop.f32.mrb[0].mxu0
        %v566 = vadd.f32 %v434, %v565
        %v567 = vpop.f32.mrb[0].mxu0
        %v568 = vadd.f32 %v438, %v567
        %v569 = vpop.f32.mrb[0].mxu0
        %v570 = vadd.f32 %v434, %v569
        %v571 = vpop.f32.mrb[0].mxu0
        %v572 = vadd.f32 %v438, %v571
        %573 = vmatprep.mubr.bf16.mxu0 0
        %574 = vmatmul.mubr.bf16.gmra.mrb[0].mxu0 %v408
        %v575 = vpop.f32.mrb[0].mxu0
        %v576 = vadd.f32 %v434, %v575
        %v577 = vpop.f32.mrb[0].mxu0
        %v578 = vadd.f32 %v438, %v577
        %v579 = vpop.f32.mrb[0].mxu0
        %v580 = vadd.f32 %v434, %v579
        %v581 = vpop.f32.mrb[0].mxu0
        %v582 = vadd.f32 %v438, %v581
        %583 = vmatprep.mubr.bf16.mxu0 0
        %584 = vmatmul.mubr.bf16.gmra.mrb[0].mxu0 %v409
        %v585 = vpop.f32.mrb[0].mxu0
        %v586 = vadd.f32 %v434, %v585
        %v587 = vpop.f32.mrb[0].mxu0
        %v588 = vadd.f32 %v438, %v587
        %v589 = vpop.f32.mrb[0].mxu0
        %v590 = vadd.f32 %v434, %v589
        %v591 = vpop.f32.mrb[0].mxu0
        %v592 = vadd.f32 %v438, %v591
        %593 = vmatprep.mubr.bf16.mxu0 0
        %594 = vmatmul.mubr.bf16.gmra.mrb[0].mxu0 %v410
        %v595 = vpop.f32.mrb[0].mxu0
        %v596 = vadd.f32 %v434, %v595
        %v597 = vpop.f32.mrb[0].mxu0
        %v598 = vadd.f32 %v438, %v597
        %v599 = vpop.f32.mrb[0].mxu0
        %v600 = vadd.f32 %v434, %v599
        %v601 = vpop.f32.mrb[0].mxu0
        %v602 = vadd.f32 %v438, %v601
        %603 = vmatprep.mubr.bf16.mxu0 0
        %604 = vmatmul.mubr.bf16.gmra.mrb[0].mxu0 %v411
        %v605 = vpop.f32.mrb[0].mxu0
        %v606 = vadd.f32 %v434, %v605
        %v607 = vpop.f32.mrb[0].mxu0
        %v608 = vadd.f32 %v438, %v607
        %v609 = vpop.f32.mrb[0].mxu0
        %v610 = vadd.f32 %v434, %v609
        %v611 = vpop.f32.mrb[0].mxu0
        %v612 = vadd.f32 %v438, %v611
        %613 = vmatprep.mubr.bf16.mxu0 0
        %614 = vmatmul.mubr.bf16.gmra.mrb[0].mxu0 %v412
        %v615 = vpop.f32.mrb[0].mxu0
        %v616 = vadd.f32 %v434, %v615
        %v617 = vpop.f32.mrb[0].mxu0
        %v618 = vadd.f32 %v438, %v617
        %v619 = vpop.f32.mrb[0].mxu0
        %v620 = vadd.f32 %v434, %v619
        %v621 = vpop.f32.mrb[0].mxu0
        %v622 = vadd.f32 %v438, %v621
        %623 = vmatprep.mubr.bf16.mxu0 0
        %624 = vmatmul.mubr.bf16.gmra.mrb[0].mxu0 %v413
        %v625 = vpop.f32.mrb[0].mxu0
        %v626 = vadd.f32 %v434, %v625
        %v627 = vpop.f32.mrb[0].mxu0
        %v628 = vadd.f32 %v438, %v627
        %v629 = vpop.f32.mrb[0].mxu0
        %v630 = vadd.f32 %v434, %v629
        %v631 = vpop.f32.mrb[0].mxu0
        %v632 = vadd.f32 %v438, %v631
        %633 = vdwg.mxu0
        %v634 = vadd.f32 %v556, %v558
        %635 = vadd.xlane.f32.xlu0 %v634
        %v636 = vpop.xlane.xlu0 %635
        %v637 = vadd.f32 %v560, %v562
        %638 = vadd.xlane.f32.xlu0 %v637
        %v639 = vpop.xlane.xlu0 %638
        %v640 = vadd.f32 %v566, %v568
        %641 = vadd.xlane.f32.xlu0 %v640
        %v642 = vpop.xlane.xlu0 %641
        %v643 = vadd.f32 %v570, %v572
        %644 = vadd.xlane.f32.xlu0 %v643
        %v645 = vpop.xlane.xlu0 %644
        %v646 = vadd.f32 %v576, %v578
        %647 = vadd.xlane.f32.xlu0 %v646
        %v648 = vpop.xlane.xlu0 %647
        %v649 = vadd.f32 %v580, %v582
        %650 = vadd.xlane.f32.xlu0 %v649
        %v651 = vpop.xlane.xlu0 %650
        %v652 = vadd.f32 %v586, %v588
        %653 = vadd.xlane.f32.xlu0 %v652
        %v654 = vpop.xlane.xlu0 %653
        %v655 = vadd.f32 %v590, %v592
        %656 = vadd.xlane.f32.xlu0 %v655
        %v657 = vpop.xlane.xlu0 %656
        %v658 = vadd.f32 %v596, %v598
        %659 = vadd.xlane.f32.xlu0 %v658
        %v660 = vpop.xlane.xlu0 %659
        %v661 = vadd.f32 %v600, %v602
        %662 = vadd.xlane.f32.xlu0 %v661
        %v663 = vpop.xlane.xlu0 %662
        %v664 = vadd.f32 %v606, %v608
        %665 = vadd.xlane.f32.xlu0 %v664
        %v666 = vpop.xlane.xlu0 %665
        %v667 = vadd.f32 %v610, %v612
        %668 = vadd.xlane.f32.xlu0 %v667
        %v669 = vpop.xlane.xlu0 %668
        %v670 = vadd.f32 %v616, %v618
        %671 = vadd.xlane.f32.xlu0 %v670
        %v672 = vpop.xlane.xlu0 %671
        %v673 = vadd.f32 %v620, %v622
        %674 = vadd.xlane.f32.xlu0 %v673
        %v675 = vpop.xlane.xlu0 %674
        %v676 = vadd.f32 %v626, %v628
        %677 = vadd.xlane.f32.xlu0 %v676
        %v678 = vpop.xlane.xlu0 %677
        %v679 = vadd.f32 %v630, %v632
        %680 = vadd.xlane.f32.xlu0 %v679
        %v681 = vpop.xlane.xlu0 %680
        %v682 = vrcp.pop 256.0
        %v683 = vmul.f32 %v636, %v682
        %v684 = vmul.f32 %v639, %v682
        %v685 = vmul.f32 %v642, %v682
        %v686 = vmul.f32 %v645, %v682
        %v687 = vmul.f32 %v648, %v682
        %v688 = vmul.f32 %v651, %v682
        %v689 = vmul.f32 %v654, %v682
        %v690 = vmul.f32 %v657, %v682
        %v691 = vmul.f32 %v660, %v682
        %v692 = vmul.f32 %v663, %v682
        %v693 = vmul.f32 %v666, %v682
        %v694 = vmul.f32 %v669, %v682
        %v695 = vmul.f32 %v672, %v682
        %v696 = vmul.f32 %v675, %v682
        %v697 = vmul.f32 %v678, %v682
        %v698 = vmul.f32 %v681, %v682
        %v699 = vsub.f32 %v556, %v683
        %v700 = vsub.f32 %v558, %v683
        %v701 = vsub.f32 %v560, %v684
        %v702 = vsub.f32 %v562, %v684
        %v703 = vsub.f32 %v566, %v685
        %v704 = vsub.f32 %v568, %v685
        %v705 = vsub.f32 %v570, %v686
        %v706 = vsub.f32 %v572, %v686
        %v707 = vsub.f32 %v576, %v687
        %v708 = vsub.f32 %v578, %v687
        %v709 = vsub.f32 %v580, %v688
        %v710 = vsub.f32 %v582, %v688
        %v711 = vsub.f32 %v586, %v689
        %v712 = vsub.f32 %v588, %v689
        %v713 = vsub.f32 %v590, %v690
        %v714 = vsub.f32 %v592, %v690
        %v715 = vsub.f32 %v596, %v691
        %v716 = vsub.f32 %v598, %v691
        %v717 = vsub.f32 %v600, %v692
        %v718 = vsub.f32 %v602, %v692
        %v719 = vsub.f32 %v606, %v693
        %v720 = vsub.f32 %v608, %v693
        %v721 = vsub.f32 %v610, %v694
        %v722 = vsub.f32 %v612, %v694
        %v723 = vsub.f32 %v616, %v695
        %v724 = vsub.f32 %v618, %v695
        %v725 = vsub.f32 %v620, %v696
        %v726 = vsub.f32 %v622, %v696
        %v727 = vsub.f32 %v626, %v697
        %v728 = vsub.f32 %v628, %v697
        %v729 = vsub.f32 %v630, %v698
        %v730 = vsub.f32 %v632, %v698
        %v731 = vmul.f32 %v699, %v699
        %v732 = vmul.f32 %v700, %v700
        %v733 = vmul.f32 %v701, %v701
        %v734 = vmul.f32 %v702, %v702
        %v735 = vmul.f32 %v703, %v703
        %v736 = vmul.f32 %v704, %v704
        %v737 = vmul.f32 %v705, %v705
        %v738 = vmul.f32 %v706, %v706
        %v739 = vmul.f32 %v707, %v707
        %v740 = vmul.f32 %v708, %v708
        %v741 = vmul.f32 %v709, %v709
        %v742 = vmul.f32 %v710, %v710
        %v743 = vmul.f32 %v711, %v711
        %v744 = vmul.f32 %v712, %v712
        %v745 = vmul.f32 %v713, %v713
        %v746 = vmul.f32 %v714, %v714
        %v747 = vmul.f32 %v715, %v715
        %v748 = vmul.f32 %v716, %v716
        %v749 = vmul.f32 %v717, %v717
        %v750 = vmul.f32 %v718, %v718
        %v751 = vmul.f32 %v719, %v719
        %v752 = vmul.f32 %v720, %v720
        %v753 = vmul.f32 %v721, %v721
        %v754 = vmul.f32 %v722, %v722
        %v755 = vmul.f32 %v723, %v723
        %v756 = vmul.f32 %v724, %v724
        %v757 = vmul.f32 %v725, %v725
        %v758 = vmul.f32 %v726, %v726
        %v759 = vmul.f32 %v727, %v727
        %v760 = vmul.f32 %v728, %v728
        %v761 = vmul.f32 %v729, %v729
        %v762 = vmul.f32 %v730, %v730
        %v763 = vadd.f32 %v731, %v732
        %764 = vadd.xlane.f32.xlu0 %v763
        %v765 = vpop.xlane.xlu0 %764
        %v766 = vadd.f32 %v733, %v734
        %767 = vadd.xlane.f32.xlu0 %v766
        %v768 = vpop.xlane.xlu0 %767
        %v769 = vadd.f32 %v735, %v736
        %770 = vadd.xlane.f32.xlu0 %v769
        %v771 = vpop.xlane.xlu0 %770
        %v772 = vadd.f32 %v737, %v738
        %773 = vadd.xlane.f32.xlu0 %v772
        %v774 = vpop.xlane.xlu0 %773
        %v775 = vadd.f32 %v739, %v740
        %776 = vadd.xlane.f32.xlu0 %v775
        %v777 = vpop.xlane.xlu0 %776
        %v778 = vadd.f32 %v741, %v742
        %779 = vadd.xlane.f32.xlu0 %v778
        %v780 = vpop.xlane.xlu0 %779
        %v781 = vadd.f32 %v743, %v744
        %782 = vadd.xlane.f32.xlu0 %v781
        %v783 = vpop.xlane.xlu0 %782
        %v784 = vadd.f32 %v745, %v746
        %785 = vadd.xlane.f32.xlu0 %v784
        %v786 = vpop.xlane.xlu0 %785
        %v787 = vadd.f32 %v747, %v748
        %788 = vadd.xlane.f32.xlu0 %v787
        %v789 = vpop.xlane.xlu0 %788
        %v790 = vadd.f32 %v749, %v750
        %791 = vadd.xlane.f32.xlu0 %v790
        %v792 = vpop.xlane.xlu0 %791
        %v793 = vadd.f32 %v751, %v752
        %794 = vadd.xlane.f32.xlu0 %v793
        %v795 = vpop.xlane.xlu0 %794
        %v796 = vadd.f32 %v753, %v754
        %797 = vadd.xlane.f32.xlu0 %v796
        %v798 = vpop.xlane.xlu0 %797
        %v799 = vadd.f32 %v755, %v756
        %800 = vadd.xlane.f32.xlu0 %v799
        %v801 = vpop.xlane.xlu0 %800
        %v802 = vadd.f32 %v757, %v758
        %803 = vadd.xlane.f32.xlu0 %v802
        %v804 = vpop.xlane.xlu0 %803
        %v805 = vadd.f32 %v759, %v760
        %806 = vadd.xlane.f32.xlu0 %v805
        %v807 = vpop.xlane.xlu0 %806
        %v808 = vadd.f32 %v761, %v762
        %809 = vadd.xlane.f32.xlu0 %v808
        %v810 = vpop.xlane.xlu0 %809
        %v811 = vmul.f32 %v765, %v682
        %v812 = vmul.f32 %v768, %v682
        %v813 = vmul.f32 %v771, %v682
        %v814 = vmul.f32 %v774, %v682
        %v815 = vmul.f32 %v777, %v682
        %v816 = vmul.f32 %v780, %v682
        %v817 = vmul.f32 %v783, %v682
        %v818 = vmul.f32 %v786, %v682
        %v819 = vmul.f32 %v789, %v682
        %v820 = vmul.f32 %v792, %v682
        %v821 = vmul.f32 %v795, %v682
        %v822 = vmul.f32 %v798, %v682
        %v823 = vmul.f32 %v801, %v682
        %v824 = vmul.f32 %v804, %v682
        %v825 = vmul.f32 %v807, %v682
        %v826 = vmul.f32 %v810, %v682
        %v827 = vadd.f32 %v811, 1e-05
        %v828 = vadd.f32 %v812, 1e-05
        %v829 = vadd.f32 %v813, 1e-05
        %v830 = vadd.f32 %v814, 1e-05
        %v831 = vadd.f32 %v815, 1e-05
        %v832 = vadd.f32 %v816, 1e-05
        %v833 = vadd.f32 %v817, 1e-05
        %v834 = vadd.f32 %v818, 1e-05
        %v835 = vadd.f32 %v819, 1e-05
        %v836 = vadd.f32 %v820, 1e-05
        %v837 = vadd.f32 %v821, 1e-05
        %v838 = vadd.f32 %v822, 1e-05
        %v839 = vadd.f32 %v823, 1e-05
        %v840 = vadd.f32 %v824, 1e-05
        %v841 = vadd.f32 %v825, 1e-05
        %v842 = vadd.f32 %v826, 1e-05
        %v843 = vrsqrt.pop %v827
        %v844 = vrsqrt.pop %v828
        %v845 = vrsqrt.pop %v829
        %v846 = vrsqrt.pop %v830
        %v847 = vrsqrt.pop %v831
        %v848 = vrsqrt.pop %v832
        %v849 = vrsqrt.pop %v833
        %v850 = vrsqrt.pop %v834
        %v851 = vrsqrt.pop %v835
        %v852 = vrsqrt.pop %v836
        %v853 = vrsqrt.pop %v837
        %v854 = vrsqrt.pop %v838
        %v855 = vrsqrt.pop %v839
        %v856 = vrsqrt.pop %v840
        %v857 = vrsqrt.pop %v841
        %v858 = vrsqrt.pop %v842
        %v859 = vmul.f32 %v699, %v843
        %v860 = vmul.f32 %v700, %v843
        %v861 = vmul.f32 %v701, %v844
        %v862 = vmul.f32 %v702, %v844
        %v863 = vmul.f32 %v703, %v845
        %v864 = vmul.f32 %v704, %v845
        %v865 = vmul.f32 %v705, %v846
        %v866 = vmul.f32 %v706, %v846
        %v867 = vmul.f32 %v707, %v847
        %v868 = vmul.f32 %v708, %v847
        %v869 = vmul.f32 %v709, %v848
        %v870 = vmul.f32 %v710, %v848
        %v871 = vmul.f32 %v711, %v849
        %v872 = vmul.f32 %v712, %v849
        %v873 = vmul.f32 %v713, %v850
        %v874 = vmul.f32 %v714, %v850
        %v875 = vmul.f32 %v715, %v851
        %v876 = vmul.f32 %v716, %v851
        %v877 = vmul.f32 %v717, %v852
        %v878 = vmul.f32 %v718, %v852
        %v879 = vmul.f32 %v719, %v853
        %v880 = vmul.f32 %v720, %v853
        %v881 = vmul.f32 %v721, %v854
        %v882 = vmul.f32 %v722, %v854
        %v883 = vmul.f32 %v723, %v855
        %v884 = vmul.f32 %v724, %v855
        %v885 = vmul.f32 %v725, %v856
        %v886 = vmul.f32 %v726, %v856
        %v887 = vmul.f32 %v727, %v857
        %v888 = vmul.f32 %v728, %v857
        %v889 = vmul.f32 %v729, %v858
        %v890 = vmul.f32 %v730, %v858
        %v892 = vlaneseq
        %v893 = vshrl.u32 %v892, 7
        %v894 = vsub.s32 0, %v893
        %v895 = vrot.slane %v391, %v894
        %v896 = vlaneseq
        %v897 = vshrl.u32 %v896, 7
        %v898 = vsub.s32 1, %v897
        %v899 = vrot.slane %v391, %v898
        %v902 = vmul.f32 %v859, %v895
        %v903 = vmul.f32 %v860, %v899
        %v904 = vmul.f32 %v861, %v895
        %v905 = vmul.f32 %v862, %v899
        %v906 = vmul.f32 %v863, %v895
        %v907 = vmul.f32 %v864, %v899
        %v908 = vmul.f32 %v865, %v895
        %v909 = vmul.f32 %v866, %v899
        %v910 = vmul.f32 %v867, %v895
        %v911 = vmul.f32 %v868, %v899
        %v912 = vmul.f32 %v869, %v895
        %v913 = vmul.f32 %v870, %v899
        %v914 = vmul.f32 %v871, %v895
        %v915 = vmul.f32 %v872, %v899
        %v916 = vmul.f32 %v873, %v895
        %v917 = vmul.f32 %v874, %v899
        %v918 = vmul.f32 %v875, %v895
        %v919 = vmul.f32 %v876, %v899
        %v920 = vmul.f32 %v877, %v895
        %v921 = vmul.f32 %v878, %v899
        %v922 = vmul.f32 %v879, %v895
        %v923 = vmul.f32 %v880, %v899
        %v924 = vmul.f32 %v881, %v895
        %v925 = vmul.f32 %v882, %v899
        %v926 = vmul.f32 %v883, %v895
        %v927 = vmul.f32 %v884, %v899
        %v928 = vmul.f32 %v885, %v895
        %v929 = vmul.f32 %v886, %v899
        %v930 = vmul.f32 %v887, %v895
        %v931 = vmul.f32 %v888, %v899
        %v932 = vmul.f32 %v889, %v895
        %v933 = vmul.f32 %v890, %v899
        %v935 = vlaneseq
        %v936 = vshrl.u32 %v935, 7
        %v937 = vsub.s32 0, %v936
        %v938 = vrot.slane %v393, %v937
        %v939 = vlaneseq
        %v940 = vshrl.u32 %v939, 7
        %v941 = vsub.s32 1, %v940
        %v942 = vrot.slane %v393, %v941
        %v945 = vadd.f32 %v902, %v938
        %v946 = vadd.f32 %v903, %v942
        %v947 = vadd.f32 %v904, %v938
        %v948 = vadd.f32 %v905, %v942
        %v949 = vadd.f32 %v906, %v938
        %v950 = vadd.f32 %v907, %v942
        %v951 = vadd.f32 %v908, %v938
        %v952 = vadd.f32 %v909, %v942
        %v953 = vadd.f32 %v910, %v938
        %v954 = vadd.f32 %v911, %v942
        %v955 = vadd.f32 %v912, %v938
        %v956 = vadd.f32 %v913, %v942
        %v957 = vadd.f32 %v914, %v938
        %v958 = vadd.f32 %v915, %v942
        %v959 = vadd.f32 %v916, %v938
        %v960 = vadd.f32 %v917, %v942
        %v961 = vadd.f32 %v918, %v938
        %v962 = vadd.f32 %v919, %v942
        %v963 = vadd.f32 %v920, %v938
        %v964 = vadd.f32 %v921, %v942
        %v965 = vadd.f32 %v922, %v938
        %v966 = vadd.f32 %v923, %v942
        %v967 = vadd.f32 %v924, %v938
        %v968 = vadd.f32 %v925, %v942
        %v969 = vadd.f32 %v926, %v938
        %v970 = vadd.f32 %v927, %v942
        %v971 = vadd.f32 %v928, %v938
        %v972 = vadd.f32 %v929, %v942
        %v973 = vadd.f32 %v930, %v938
        %v974 = vadd.f32 %v931, %v942
        %v975 = vadd.f32 %v932, %v938
        %v976 = vadd.f32 %v933, %v942
        %v977 = vmul.f32 %v945, 0.2
        %v978 = vmul.f32 %v946, 0.2
        %v979 = vmul.f32 %v947, 0.2
        %v980 = vmul.f32 %v948, 0.2
        %v981 = vmul.f32 %v949, 0.2
        %v982 = vmul.f32 %v950, 0.2
        %v983 = vmul.f32 %v951, 0.2
        %v984 = vmul.f32 %v952, 0.2
        %v985 = vmul.f32 %v953, 0.2
        %v986 = vmul.f32 %v954, 0.2
        %v987 = vmul.f32 %v955, 0.2
        %v988 = vmul.f32 %v956, 0.2
        %v989 = vmul.f32 %v957, 0.2
        %v990 = vmul.f32 %v958, 0.2
        %v991 = vmul.f32 %v959, 0.2
        %v992 = vmul.f32 %v960, 0.2
        %v993 = vmul.f32 %v961, 0.2
        %v994 = vmul.f32 %v962, 0.2
        %v995 = vmul.f32 %v963, 0.2
        %v996 = vmul.f32 %v964, 0.2
        %v997 = vmul.f32 %v965, 0.2
        %v998 = vmul.f32 %v966, 0.2
        %v999 = vmul.f32 %v967, 0.2
        %v1000 = vmul.f32 %v968, 0.2
        %v1001 = vmul.f32 %v969, 0.2
        %v1002 = vmul.f32 %v970, 0.2
        %v1003 = vmul.f32 %v971, 0.2
        %v1004 = vmul.f32 %v972, 0.2
        %v1005 = vmul.f32 %v973, 0.2
        %v1006 = vmul.f32 %v974, 0.2
        %v1007 = vmul.f32 %v975, 0.2
        %v1008 = vmul.f32 %v976, 0.2
        %v1009 = vmax.f32 %v945, %v977
        %v1010 = vmax.f32 %v946, %v978
        %v1011 = vmax.f32 %v947, %v979
        %v1012 = vmax.f32 %v948, %v980
        %v1013 = vmax.f32 %v949, %v981
        %v1014 = vmax.f32 %v950, %v982
        %v1015 = vmax.f32 %v951, %v983
        %v1016 = vmax.f32 %v952, %v984
        %v1017 = vmax.f32 %v953, %v985
        %v1018 = vmax.f32 %v954, %v986
        %v1019 = vmax.f32 %v955, %v987
        %v1020 = vmax.f32 %v956, %v988
        %v1021 = vmax.f32 %v957, %v989
        %v1022 = vmax.f32 %v958, %v990
        %v1023 = vmax.f32 %v959, %v991
        %v1024 = vmax.f32 %v960, %v992
        %v1025 = vmax.f32 %v961, %v993
        %v1026 = vmax.f32 %v962, %v994
        %v1027 = vmax.f32 %v963, %v995
        %v1028 = vmax.f32 %v964, %v996
        %v1029 = vmax.f32 %v965, %v997
        %v1030 = vmax.f32 %v966, %v998
        %v1031 = vmax.f32 %v967, %v999
        %v1032 = vmax.f32 %v968, %v1000
        %v1033 = vmax.f32 %v969, %v1001
        %v1034 = vmax.f32 %v970, %v1002
        %v1035 = vmax.f32 %v971, %v1003
        %v1036 = vmax.f32 %v972, %v1004
        %v1037 = vmax.f32 %v973, %v1005
        %v1038 = vmax.f32 %v974, %v1006
        %v1039 = vmax.f32 %v975, %v1007
        %v1040 = vmax.f32 %v976, %v1008
        %v1041 = vpack.c.bf16 %v1011, %v1009
        %v1042 = vpack.c.bf16 %v1012, %v1010
        %v1043 = vpack.c.bf16 %v1015, %v1013
        %v1044 = vpack.c.bf16 %v1016, %v1014
        %v1045 = vpack.c.bf16 %v1019, %v1017
        %v1046 = vpack.c.bf16 %v1020, %v1018
        %v1047 = vpack.c.bf16 %v1023, %v1021
        %v1048 = vpack.c.bf16 %v1024, %v1022
        %v1049 = vpack.c.bf16 %v1027, %v1025
        %v1050 = vpack.c.bf16 %v1028, %v1026
        %v1051 = vpack.c.bf16 %v1031, %v1029
        %v1052 = vpack.c.bf16 %v1032, %v1030
        %v1053 = vpack.c.bf16 %v1035, %v1033
        %v1054 = vpack.c.bf16 %v1036, %v1034
        %v1055 = vpack.c.bf16 %v1039, %v1037
        %v1056 = vpack.c.bf16 %v1040, %v1038
        %v1057 = vld [vmem:[#allocation7] sm:$0xff]
        %v1058 = vld [vmem:[#allocation7 + $0x8] sm:$0xff]
        %v1059 = vld [vmem:[#allocation7 + $0x10] sm:$0xff]
        %v1060 = vld [vmem:[#allocation7 + $0x18] sm:$0xff]
        %v1061 = vld [vmem:[#allocation7 + $0x20] sm:$0xff]
        %v1062 = vld [vmem:[#allocation7 + $0x28] sm:$0xff]
        %v1063 = vld [vmem:[#allocation7 + $0x30] sm:$0xff]
        %v1064 = vld [vmem:[#allocation7 + $0x38] sm:$0xff]
        %v1065 = vld [vmem:[#allocation7 + $0x40] sm:$0xff]
        %v1066 = vld [vmem:[#allocation7 + $0x48] sm:$0xff]
        %v1067 = vld [vmem:[#allocation7 + $0x50] sm:$0xff]
        %v1068 = vld [vmem:[#allocation7 + $0x58] sm:$0xff]
        %v1069 = vld [vmem:[#allocation7 + $0x60] sm:$0xff]
        %v1070 = vld [vmem:[#allocation7 + $0x68] sm:$0xff]
        %v1071 = vld [vmem:[#allocation7 + $0x70] sm:$0xff]
        %v1072 = vld [vmem:[#allocation7 + $0x78] sm:$0xff]
        %v1073 = vld [vmem:[#allocation7 + $0x80] sm:$0xff]
        %v1074 = vld [vmem:[#allocation7 + $0x88] sm:$0xff]
        %v1075 = vld [vmem:[#allocation7 + $0x90] sm:$0xff]
        %v1076 = vld [vmem:[#allocation7 + $0x98] sm:$0xff]
        %v1077 = vld [vmem:[#allocation7 + $0xa0] sm:$0xff]
        %v1078 = vld [vmem:[#allocation7 + $0xa8] sm:$0xff]
        %v1079 = vld [vmem:[#allocation7 + $0xb0] sm:$0xff]
        %v1080 = vld [vmem:[#allocation7 + $0xb8] sm:$0xff]
        %v1081 = vld [vmem:[#allocation7 + $0xc0] sm:$0xff]
        %v1082 = vld [vmem:[#allocation7 + $0xc8] sm:$0xff]
        %v1083 = vld [vmem:[#allocation7 + $0xd0] sm:$0xff]
        %v1084 = vld [vmem:[#allocation7 + $0xd8] sm:$0xff]
        %v1085 = vld [vmem:[#allocation7 + $0xe0] sm:$0xff]
        %v1086 = vld [vmem:[#allocation7 + $0xe8] sm:$0xff]
        %v1087 = vld [vmem:[#allocation7 + $0xf0] sm:$0xff]
        %v1088 = vld [vmem:[#allocation7 + $0xf8] sm:$0xff]
        %v1090 = vlaneseq
        %v1091 = vshrl.u32 %v1090, 7
        %v1092 = vsub.s32 0, %v1091
        %v1093 = vrot.slane %v395, %v1092
        %v1094 = vlaneseq
        %v1095 = vshrl.u32 %v1094, 7
        %v1096 = vsub.s32 1, %v1095
        %v1097 = vrot.slane %v395, %v1096
        %v1132 = vunpack.c.l.b16 %v1057
        %v1133 = vunpack.c.h.b16 %v1057
        %v1134 = vunpack.c.l.b16 %v1058
        %v1135 = vunpack.c.h.b16 %v1058
        %v1136 = vunpack.c.l.b16 %v1059
        %v1137 = vunpack.c.h.b16 %v1059
        %v1138 = vunpack.c.l.b16 %v1060
        %v1139 = vunpack.c.h.b16 %v1060
        %v1140 = vunpack.c.l.b16 %v1061
        %v1141 = vunpack.c.h.b16 %v1061
        %v1142 = vunpack.c.l.b16 %v1062
        %v1143 = vunpack.c.h.b16 %v1062
        %v1144 = vunpack.c.l.b16 %v1063
        %v1145 = vunpack.c.h.b16 %v1063
        %v1146 = vunpack.c.l.b16 %v1064
        %v1147 = vunpack.c.h.b16 %v1064
        %v1148 = vunpack.c.l.b16 %v1065
        %v1149 = vunpack.c.h.b16 %v1065
        %v1150 = vunpack.c.l.b16 %v1066
        %v1151 = vunpack.c.h.b16 %v1066
        %v1152 = vunpack.c.l.b16 %v1067
        %v1153 = vunpack.c.h.b16 %v1067
        %v1154 = vunpack.c.l.b16 %v1068
        %v1155 = vunpack.c.h.b16 %v1068
        %v1156 = vunpack.c.l.b16 %v1069
        %v1157 = vunpack.c.h.b16 %v1069
        %v1158 = vunpack.c.l.b16 %v1070
        %v1159 = vunpack.c.h.b16 %v1070
        %v1160 = vunpack.c.l.b16 %v1071
        %v1161 = vunpack.c.h.b16 %v1071
        %v1162 = vunpack.c.l.b16 %v1072
        %v1163 = vunpack.c.h.b16 %v1072
        %v1164 = vunpack.c.l.b16 %v1073
        %v1165 = vunpack.c.h.b16 %v1073
        %v1166 = vunpack.c.l.b16 %v1074
        %v1167 = vunpack.c.h.b16 %v1074
        %v1168 = vunpack.c.l.b16 %v1075
        %v1169 = vunpack.c.h.b16 %v1075
        %v1170 = vunpack.c.l.b16 %v1076
        %v1171 = vunpack.c.h.b16 %v1076
        %v1172 = vunpack.c.l.b16 %v1077
        %v1173 = vunpack.c.h.b16 %v1077
        %v1174 = vunpack.c.l.b16 %v1078
        %v1175 = vunpack.c.h.b16 %v1078
        %v1176 = vunpack.c.l.b16 %v1079
        %v1177 = vunpack.c.h.b16 %v1079
        %v1178 = vunpack.c.l.b16 %v1080
        %v1179 = vunpack.c.h.b16 %v1080
        %v1180 = vunpack.c.l.b16 %v1081
        %v1181 = vunpack.c.h.b16 %v1081
        %v1182 = vunpack.c.l.b16 %v1082
        %v1183 = vunpack.c.h.b16 %v1082
        %v1184 = vunpack.c.l.b16 %v1083
        %v1185 = vunpack.c.h.b16 %v1083
        %v1186 = vunpack.c.l.b16 %v1084
        %v1187 = vunpack.c.h.b16 %v1084
        %v1188 = vunpack.c.l.b16 %v1085
        %v1189 = vunpack.c.h.b16 %v1085
        %v1190 = vunpack.c.l.b16 %v1086
        %v1191 = vunpack.c.h.b16 %v1086
        %v1192 = vunpack.c.l.b16 %v1087
        %v1193 = vunpack.c.h.b16 %v1087
        %v1194 = vunpack.c.l.b16 %v1088
        %v1195 = vunpack.c.h.b16 %v1088
        %v1196 = vpack.c.b16 %v1134, %v1132
        %v1197 = vpack.c.b16 %v1135, %v1133
        %v1198 = vpack.c.b16 %v1138, %v1136
        %v1199 = vpack.c.b16 %v1139, %v1137
        %v1200 = vpack.c.b16 %v1142, %v1140
        %v1201 = vpack.c.b16 %v1143, %v1141
        %v1202 = vpack.c.b16 %v1146, %v1144
        %v1203 = vpack.c.b16 %v1147, %v1145
        %v1204 = vpack.c.b16 %v1150, %v1148
        %v1205 = vpack.c.b16 %v1151, %v1149
        %v1206 = vpack.c.b16 %v1154, %v1152
        %v1207 = vpack.c.b16 %v1155, %v1153
        %v1208 = vpack.c.b16 %v1158, %v1156
        %v1209 = vpack.c.b16 %v1159, %v1157
        %v1210 = vpack.c.b16 %v1162, %v1160
        %v1211 = vpack.c.b16 %v1163, %v1161
        %v1212 = vpack.c.b16 %v1166, %v1164
        %v1213 = vpack.c.b16 %v1167, %v1165
        %v1214 = vpack.c.b16 %v1170, %v1168
        %v1215 = vpack.c.b16 %v1171, %v1169
        %v1216 = vpack.c.b16 %v1174, %v1172
        %v1217 = vpack.c.b16 %v1175, %v1173
        %v1218 = vpack.c.b16 %v1178, %v1176
        %v1219 = vpack.c.b16 %v1179, %v1177
        %v1220 = vpack.c.b16 %v1182, %v1180
        %v1221 = vpack.c.b16 %v1183, %v1181
        %v1222 = vpack.c.b16 %v1186, %v1184
        %v1223 = vpack.c.b16 %v1187, %v1185
        %v1224 = vpack.c.b16 %v1190, %v1188
        %v1225 = vpack.c.b16 %v1191, %v1189
        %v1226 = vpack.c.b16 %v1194, %v1192
        %v1227 = vpack.c.b16 %v1195, %v1193
        %1260 = vmatprep.subr.bf16.mxu0 %v1197
        %1261 = vmatpush1.bf16.msra.mxu0 %v1196
        %1262 = vmatprep.subr.bf16.mxu0 %v1199
        %1263 = vmatpush1.bf16.msra.mxu0 %v1198
        %1264 = vmatprep.subr.bf16.mxu0 %v1201
        %1265 = vmatpush1.bf16.msra.mxu0 %v1200
        %1266 = vmatprep.subr.bf16.mxu0 %v1203
        %1267 = vmatpush1.bf16.msra.mxu0 %v1202
        %1268 = vmatprep.subr.bf16.mxu0 %v1205
        %1269 = vmatpush1.bf16.msra.mxu0 %v1204
        %1270 = vmatprep.subr.bf16.mxu0 %v1207
        %1271 = vmatpush1.bf16.msra.mxu0 %v1206
        %1272 = vmatprep.subr.bf16.mxu0 %v1209
        %1273 = vmatpush1.bf16.msra.mxu0 %v1208
        %1274 = vmatprep.subr.bf16.mxu0 %v1211
        %1275 = vmatpush1.bf16.msra.mxu0 %v1210
        %1276 = vmatprep.subr.bf16.mxu0 %v1213
        %1277 = vmatpush1.bf16.msra.mxu0 %v1212
        %1278 = vmatprep.subr.bf16.mxu0 %v1215
        %1279 = vmatpush1.bf16.msra.mxu0 %v1214
        %1280 = vmatprep.subr.bf16.mxu0 %v1217
        %1281 = vmatpush1.bf16.msra.mxu0 %v1216
        %1282 = vmatprep.subr.bf16.mxu0 %v1219
        %1283 = vmatpush1.bf16.msra.mxu0 %v1218
        %1284 = vmatprep.subr.bf16.mxu0 %v1221
        %1285 = vmatpush1.bf16.msra.mxu0 %v1220
        %1286 = vmatprep.subr.bf16.mxu0 %v1223
        %1287 = vmatpush1.bf16.msra.mxu0 %v1222
        %1288 = vmatprep.subr.bf16.mxu0 %v1225
        %1289 = vmatpush1.bf16.msra.mxu0 %v1224
        %1290 = vmatprep.subr.bf16.mxu0 %v1227
        %1291 = vmatpush1.bf16.msra.mxu0 %v1226
        %1292 = vmatprep.mubr.bf16.mxu0 %v1042
        %1293 = vmatmul.mubr.bf16.gmra.mrb[0].mxu0 %v1041
        %v1294 = vpop.f32.mrb[0].mxu0
        %v1295 = vadd.f32 %v1093, %v1294
        %v1296 = vpop.f32.mrb[0].mxu0
        %v1297 = vadd.f32 %v1097, %v1296
        %v1298 = vpop.f32.mrb[0].mxu0
        %v1299 = vadd.f32 %v1093, %v1298
        %v1300 = vpop.f32.mrb[0].mxu0
        %v1301 = vadd.f32 %v1097, %v1300
        %1302 = vmatprep.mubr.bf16.mxu0 %v1044
        %1303 = vmatmul.mubr.bf16.gmra.mrb[0].mxu0 %v1043
        %v1304 = vpop.f32.mrb[0].mxu0
        %v1305 = vadd.f32 %v1093, %v1304
        %v1306 = vpop.f32.mrb[0].mxu0
        %v1307 = vadd.f32 %v1097, %v1306
        %v1308 = vpop.f32.mrb[0].mxu0
        %v1309 = vadd.f32 %v1093, %v1308
        %v1310 = vpop.f32.mrb[0].mxu0
        %v1311 = vadd.f32 %v1097, %v1310
        %1312 = vmatprep.mubr.bf16.mxu0 %v1046
        %1313 = vmatmul.mubr.bf16.gmra.mrb[0].mxu0 %v1045
        %v1314 = vpop.f32.mrb[0].mxu0
        %v1315 = vadd.f32 %v1093, %v1314
        %v1316 = vpop.f32.mrb[0].mxu0
        %v1317 = vadd.f32 %v1097, %v1316
        %v1318 = vpop.f32.mrb[0].mxu0
        %v1319 = vadd.f32 %v1093, %v1318
        %v1320 = vpop.f32.mrb[0].mxu0
        %v1321 = vadd.f32 %v1097, %v1320
        %1322 = vmatprep.mubr.bf16.mxu0 %v1048
        %1323 = vmatmul.mubr.bf16.gmra.mrb[0].mxu0 %v1047
        %v1324 = vpop.f32.mrb[0].mxu0
        %v1325 = vadd.f32 %v1093, %v1324
        %v1326 = vpop.f32.mrb[0].mxu0
        %v1327 = vadd.f32 %v1097, %v1326
        %v1328 = vpop.f32.mrb[0].mxu0
        %v1329 = vadd.f32 %v1093, %v1328
        %v1330 = vpop.f32.mrb[0].mxu0
        %v1331 = vadd.f32 %v1097, %v1330
        %1332 = vmatprep.mubr.bf16.mxu0 %v1050
        %1333 = vmatmul.mubr.bf16.gmra.mrb[0].mxu0 %v1049
        %v1334 = vpop.f32.mrb[0].mxu0
        %v1335 = vadd.f32 %v1093, %v1334
        %v1336 = vpop.f32.mrb[0].mxu0
        %v1337 = vadd.f32 %v1097, %v1336
        %v1338 = vpop.f32.mrb[0].mxu0
        %v1339 = vadd.f32 %v1093, %v1338
        %v1340 = vpop.f32.mrb[0].mxu0
        %v1341 = vadd.f32 %v1097, %v1340
        %1342 = vmatprep.mubr.bf16.mxu0 %v1052
        %1343 = vmatmul.mubr.bf16.gmra.mrb[0].mxu0 %v1051
        %v1344 = vpop.f32.mrb[0].mxu0
        %v1345 = vadd.f32 %v1093, %v1344
        %v1346 = vpop.f32.mrb[0].mxu0
        %v1347 = vadd.f32 %v1097, %v1346
        %v1348 = vpop.f32.mrb[0].mxu0
        %v1349 = vadd.f32 %v1093, %v1348
        %v1350 = vpop.f32.mrb[0].mxu0
        %v1351 = vadd.f32 %v1097, %v1350
        %1352 = vmatprep.mubr.bf16.mxu0 %v1054
        %1353 = vmatmul.mubr.bf16.gmra.mrb[0].mxu0 %v1053
        %v1354 = vpop.f32.mrb[0].mxu0
        %v1355 = vadd.f32 %v1093, %v1354
        %v1356 = vpop.f32.mrb[0].mxu0
        %v1357 = vadd.f32 %v1097, %v1356
        %v1358 = vpop.f32.mrb[0].mxu0
        %v1359 = vadd.f32 %v1093, %v1358
        %v1360 = vpop.f32.mrb[0].mxu0
        %v1361 = vadd.f32 %v1097, %v1360
        %1362 = vmatprep.mubr.bf16.mxu0 %v1056
        %1363 = vmatmul.mubr.bf16.gmra.mrb[0].mxu0 %v1055
        %v1364 = vpop.f32.mrb[0].mxu0
        %v1365 = vadd.f32 %v1093, %v1364
        %v1366 = vpop.f32.mrb[0].mxu0
        %v1367 = vadd.f32 %v1097, %v1366
        %v1368 = vpop.f32.mrb[0].mxu0
        %v1369 = vadd.f32 %v1093, %v1368
        %v1370 = vpop.f32.mrb[0].mxu0
        %v1371 = vadd.f32 %v1097, %v1370
        %1372 = vdwg.mxu0
        %v1373 = vadd.f32 %v1295, %v1297
        %1374 = vadd.xlane.f32.xlu0 %v1373
        %v1375 = vpop.xlane.xlu0 %1374
        %v1376 = vadd.f32 %v1299, %v1301
        %1377 = vadd.xlane.f32.xlu0 %v1376
        %v1378 = vpop.xlane.xlu0 %1377
        %v1379 = vadd.f32 %v1305, %v1307
        %1380 = vadd.xlane.f32.xlu0 %v1379
        %v1381 = vpop.xlane.xlu0 %1380
        %v1382 = vadd.f32 %v1309, %v1311
        %1383 = vadd.xlane.f32.xlu0 %v1382
        %v1384 = vpop.xlane.xlu0 %1383
        %v1385 = vadd.f32 %v1315, %v1317
        %1386 = vadd.xlane.f32.xlu0 %v1385
        %v1387 = vpop.xlane.xlu0 %1386
        %v1388 = vadd.f32 %v1319, %v1321
        %1389 = vadd.xlane.f32.xlu0 %v1388
        %v1390 = vpop.xlane.xlu0 %1389
        %v1391 = vadd.f32 %v1325, %v1327
        %1392 = vadd.xlane.f32.xlu0 %v1391
        %v1393 = vpop.xlane.xlu0 %1392
        %v1394 = vadd.f32 %v1329, %v1331
        %1395 = vadd.xlane.f32.xlu0 %v1394
        %v1396 = vpop.xlane.xlu0 %1395
        %v1397 = vadd.f32 %v1335, %v1337
        %1398 = vadd.xlane.f32.xlu0 %v1397
        %v1399 = vpop.xlane.xlu0 %1398
        %v1400 = vadd.f32 %v1339, %v1341
        %1401 = vadd.xlane.f32.xlu0 %v1400
        %v1402 = vpop.xlane.xlu0 %1401
        %v1403 = vadd.f32 %v1345, %v1347
        %1404 = vadd.xlane.f32.xlu0 %v1403
        %v1405 = vpop.xlane.xlu0 %1404
        %v1406 = vadd.f32 %v1349, %v1351
        %1407 = vadd.xlane.f32.xlu0 %v1406
        %v1408 = vpop.xlane.xlu0 %1407
        %v1409 = vadd.f32 %v1355, %v1357
        %1410 = vadd.xlane.f32.xlu0 %v1409
        %v1411 = vpop.xlane.xlu0 %1410
        %v1412 = vadd.f32 %v1359, %v1361
        %1413 = vadd.xlane.f32.xlu0 %v1412
        %v1414 = vpop.xlane.xlu0 %1413
        %v1415 = vadd.f32 %v1365, %v1367
        %1416 = vadd.xlane.f32.xlu0 %v1415
        %v1417 = vpop.xlane.xlu0 %1416
        %v1418 = vadd.f32 %v1369, %v1371
        %1419 = vadd.xlane.f32.xlu0 %v1418
        %v1420 = vpop.xlane.xlu0 %1419
        %v1421 = vmul.f32 %v1375, %v682
        %v1422 = vmul.f32 %v1378, %v682
        %v1423 = vmul.f32 %v1381, %v682
        %v1424 = vmul.f32 %v1384, %v682
        %v1425 = vmul.f32 %v1387, %v682
        %v1426 = vmul.f32 %v1390, %v682
        %v1427 = vmul.f32 %v1393, %v682
        %v1428 = vmul.f32 %v1396, %v682
        %v1429 = vmul.f32 %v1399, %v682
        %v1430 = vmul.f32 %v1402, %v682
        %v1431 = vmul.f32 %v1405, %v682
        %v1432 = vmul.f32 %v1408, %v682
        %v1433 = vmul.f32 %v1411, %v682
        %v1434 = vmul.f32 %v1414, %v682
        %v1435 = vmul.f32 %v1417, %v682
        %v1436 = vmul.f32 %v1420, %v682
        %v1437 = vsub.f32 %v1295, %v1421
        %v1438 = vsub.f32 %v1297, %v1421
        %v1439 = vsub.f32 %v1299, %v1422
        %v1440 = vsub.f32 %v1301, %v1422
        %v1441 = vsub.f32 %v1305, %v1423
        %v1442 = vsub.f32 %v1307, %v1423
        %v1443 = vsub.f32 %v1309, %v1424
        %v1444 = vsub.f32 %v1311, %v1424
        %v1445 = vsub.f32 %v1315, %v1425
        %v1446 = vsub.f32 %v1317, %v1425
        %v1447 = vsub.f32 %v1319, %v1426
        %v1448 = vsub.f32 %v1321, %v1426
        %v1449 = vsub.f32 %v1325, %v1427
        %v1450 = vsub.f32 %v1327, %v1427
        %v1451 = vsub.f32 %v1329, %v1428
        %v1452 = vsub.f32 %v1331, %v1428
        %v1453 = vsub.f32 %v1335, %v1429
        %v1454 = vsub.f32 %v1337, %v1429
        %v1455 = vsub.f32 %v1339, %v1430
        %v1456 = vsub.f32 %v1341, %v1430
        %v1457 = vsub.f32 %v1345, %v1431
        %v1458 = vsub.f32 %v1347, %v1431
        %v1459 = vsub.f32 %v1349, %v1432
        %v1460 = vsub.f32 %v1351, %v1432
        %v1461 = vsub.f32 %v1355, %v1433
        %v1462 = vsub.f32 %v1357, %v1433
        %v1463 = vsub.f32 %v1359, %v1434
        %v1464 = vsub.f32 %v1361, %v1434
        %v1465 = vsub.f32 %v1365, %v1435
        %v1466 = vsub.f32 %v1367, %v1435
        %v1467 = vsub.f32 %v1369, %v1436
        %v1468 = vsub.f32 %v1371, %v1436
        %v1469 = vmul.f32 %v1437, %v1437
        %v1470 = vmul.f32 %v1438, %v1438
        %v1471 = vmul.f32 %v1439, %v1439
        %v1472 = vmul.f32 %v1440, %v1440
        %v1473 = vmul.f32 %v1441, %v1441
        %v1474 = vmul.f32 %v1442, %v1442
        %v1475 = vmul.f32 %v1443, %v1443
        %v1476 = vmul.f32 %v1444, %v1444
        %v1477 = vmul.f32 %v1445, %v1445
        %v1478 = vmul.f32 %v1446, %v1446
        %v1479 = vmul.f32 %v1447, %v1447
        %v1480 = vmul.f32 %v1448, %v1448
        %v1481 = vmul.f32 %v1449, %v1449
        %v1482 = vmul.f32 %v1450, %v1450
        %v1483 = vmul.f32 %v1451, %v1451
        %v1484 = vmul.f32 %v1452, %v1452
        %v1485 = vmul.f32 %v1453, %v1453
        %v1486 = vmul.f32 %v1454, %v1454
        %v1487 = vmul.f32 %v1455, %v1455
        %v1488 = vmul.f32 %v1456, %v1456
        %v1489 = vmul.f32 %v1457, %v1457
        %v1490 = vmul.f32 %v1458, %v1458
        %v1491 = vmul.f32 %v1459, %v1459
        %v1492 = vmul.f32 %v1460, %v1460
        %v1493 = vmul.f32 %v1461, %v1461
        %v1494 = vmul.f32 %v1462, %v1462
        %v1495 = vmul.f32 %v1463, %v1463
        %v1496 = vmul.f32 %v1464, %v1464
        %v1497 = vmul.f32 %v1465, %v1465
        %v1498 = vmul.f32 %v1466, %v1466
        %v1499 = vmul.f32 %v1467, %v1467
        %v1500 = vmul.f32 %v1468, %v1468
        %v1501 = vadd.f32 %v1469, %v1470
        %1502 = vadd.xlane.f32.xlu0 %v1501
        %v1503 = vpop.xlane.xlu0 %1502
        %v1504 = vadd.f32 %v1471, %v1472
        %1505 = vadd.xlane.f32.xlu0 %v1504
        %v1506 = vpop.xlane.xlu0 %1505
        %v1507 = vadd.f32 %v1473, %v1474
        %1508 = vadd.xlane.f32.xlu0 %v1507
        %v1509 = vpop.xlane.xlu0 %1508
        %v1510 = vadd.f32 %v1475, %v1476
        %1511 = vadd.xlane.f32.xlu0 %v1510
        %v1512 = vpop.xlane.xlu0 %1511
        %v1513 = vadd.f32 %v1477, %v1478
        %1514 = vadd.xlane.f32.xlu0 %v1513
        %v1515 = vpop.xlane.xlu0 %1514
        %v1516 = vadd.f32 %v1479, %v1480
        %1517 = vadd.xlane.f32.xlu0 %v1516
        %v1518 = vpop.xlane.xlu0 %1517
        %v1519 = vadd.f32 %v1481, %v1482
        %1520 = vadd.xlane.f32.xlu0 %v1519
        %v1521 = vpop.xlane.xlu0 %1520
        %v1522 = vadd.f32 %v1483, %v1484
        %1523 = vadd.xlane.f32.xlu0 %v1522
        %v1524 = vpop.xlane.xlu0 %1523
        %v1525 = vadd.f32 %v1485, %v1486
        %1526 = vadd.xlane.f32.xlu0 %v1525
        %v1527 = vpop.xlane.xlu0 %1526
        %v1528 = vadd.f32 %v1487, %v1488
        %1529 = vadd.xlane.f32.xlu0 %v1528
        %v1530 = vpop.xlane.xlu0 %1529
        %v1531 = vadd.f32 %v1489, %v1490
        %1532 = vadd.xlane.f32.xlu0 %v1531
        %v1533 = vpop.xlane.xlu0 %1532
        %v1534 = vadd.f32 %v1491, %v1492
        %1535 = vadd.xlane.f32.xlu0 %v1534
        %v1536 = vpop.xlane.xlu0 %1535
        %v1537 = vadd.f32 %v1493, %v1494
        %1538 = vadd.xlane.f32.xlu0 %v1537
        %v1539 = vpop.xlane.xlu0 %1538
        %v1540 = vadd.f32 %v1495, %v1496
        %1541 = vadd.xlane.f32.xlu0 %v1540
        %v1542 = vpop.xlane.xlu0 %1541
        %v1543 = vadd.f32 %v1497, %v1498
        %1544 = vadd.xlane.f32.xlu0 %v1543
        %v1545 = vpop.xlane.xlu0 %1544
        %v1546 = vadd.f32 %v1499, %v1500
        %1547 = vadd.xlane.f32.xlu0 %v1546
        %v1548 = vpop.xlane.xlu0 %1547
        %v1549 = vmul.f32 %v1503, %v682
        %v1550 = vmul.f32 %v1506, %v682
        %v1551 = vmul.f32 %v1509, %v682
        %v1552 = vmul.f32 %v1512, %v682
        %v1553 = vmul.f32 %v1515, %v682
        %v1554 = vmul.f32 %v1518, %v682
        %v1555 = vmul.f32 %v1521, %v682
        %v1556 = vmul.f32 %v1524, %v682
        %v1557 = vmul.f32 %v1527, %v682
        %v1558 = vmul.f32 %v1530, %v682
        %v1559 = vmul.f32 %v1533, %v682
        %v1560 = vmul.f32 %v1536, %v682
        %v1561 = vmul.f32 %v1539, %v682
        %v1562 = vmul.f32 %v1542, %v682
        %v1563 = vmul.f32 %v1545, %v682
        %v1564 = vmul.f32 %v1548, %v682
        %v1565 = vadd.f32 %v1549, 1e-05
        %v1566 = vadd.f32 %v1550, 1e-05
        %v1567 = vadd.f32 %v1551, 1e-05
        %v1568 = vadd.f32 %v1552, 1e-05
        %v1569 = vadd.f32 %v1553, 1e-05
        %v1570 = vadd.f32 %v1554, 1e-05
        %v1571 = vadd.f32 %v1555, 1e-05
        %v1572 = vadd.f32 %v1556, 1e-05
        %v1573 = vadd.f32 %v1557, 1e-05
        %v1574 = vadd.f32 %v1558, 1e-05
        %v1575 = vadd.f32 %v1559, 1e-05
        %v1576 = vadd.f32 %v1560, 1e-05
        %v1577 = vadd.f32 %v1561, 1e-05
        %v1578 = vadd.f32 %v1562, 1e-05
        %v1579 = vadd.f32 %v1563, 1e-05
        %v1580 = vadd.f32 %v1564, 1e-05
        %v1581 = vrsqrt.pop %v1565
        %v1582 = vrsqrt.pop %v1566
        %v1583 = vrsqrt.pop %v1567
        %v1584 = vrsqrt.pop %v1568
        %v1585 = vrsqrt.pop %v1569
        %v1586 = vrsqrt.pop %v1570
        %v1587 = vrsqrt.pop %v1571
        %v1588 = vrsqrt.pop %v1572
        %v1589 = vrsqrt.pop %v1573
        %v1590 = vrsqrt.pop %v1574
        %v1591 = vrsqrt.pop %v1575
        %v1592 = vrsqrt.pop %v1576
        %v1593 = vrsqrt.pop %v1577
        %v1594 = vrsqrt.pop %v1578
        %v1595 = vrsqrt.pop %v1579
        %v1596 = vrsqrt.pop %v1580
        %v1597 = vmul.f32 %v1437, %v1581
        %v1598 = vmul.f32 %v1438, %v1581
        %v1599 = vmul.f32 %v1439, %v1582
        %v1600 = vmul.f32 %v1440, %v1582
        %v1601 = vmul.f32 %v1441, %v1583
        %v1602 = vmul.f32 %v1442, %v1583
        %v1603 = vmul.f32 %v1443, %v1584
        %v1604 = vmul.f32 %v1444, %v1584
        %v1605 = vmul.f32 %v1445, %v1585
        %v1606 = vmul.f32 %v1446, %v1585
        %v1607 = vmul.f32 %v1447, %v1586
        %v1608 = vmul.f32 %v1448, %v1586
        %v1609 = vmul.f32 %v1449, %v1587
        %v1610 = vmul.f32 %v1450, %v1587
        %v1611 = vmul.f32 %v1451, %v1588
        %v1612 = vmul.f32 %v1452, %v1588
        %v1613 = vmul.f32 %v1453, %v1589
        %v1614 = vmul.f32 %v1454, %v1589
        %v1615 = vmul.f32 %v1455, %v1590
        %v1616 = vmul.f32 %v1456, %v1590
        %v1617 = vmul.f32 %v1457, %v1591
        %v1618 = vmul.f32 %v1458, %v1591
        %v1619 = vmul.f32 %v1459, %v1592
        %v1620 = vmul.f32 %v1460, %v1592
        %v1621 = vmul.f32 %v1461, %v1593
        %v1622 = vmul.f32 %v1462, %v1593
        %v1623 = vmul.f32 %v1463, %v1594
        %v1624 = vmul.f32 %v1464, %v1594
        %v1625 = vmul.f32 %v1465, %v1595
        %v1626 = vmul.f32 %v1466, %v1595
        %v1627 = vmul.f32 %v1467, %v1596
        %v1628 = vmul.f32 %v1468, %v1596
        %v1630 = vlaneseq
        %v1631 = vshrl.u32 %v1630, 7
        %v1632 = vsub.s32 0, %v1631
        %v1633 = vrot.slane %v397, %v1632
        %v1634 = vlaneseq
        %v1635 = vshrl.u32 %v1634, 7
        %v1636 = vsub.s32 1, %v1635
        %v1637 = vrot.slane %v397, %v1636
        %v1640 = vmul.f32 %v1597, %v1633
        %v1641 = vmul.f32 %v1598, %v1637
        %v1642 = vmul.f32 %v1599, %v1633
        %v1643 = vmul.f32 %v1600, %v1637
        %v1644 = vmul.f32 %v1601, %v1633
        %v1645 = vmul.f32 %v1602, %v1637
        %v1646 = vmul.f32 %v1603, %v1633
        %v1647 = vmul.f32 %v1604, %v1637
        %v1648 = vmul.f32 %v1605, %v1633
        %v1649 = vmul.f32 %v1606, %v1637
        %v1650 = vmul.f32 %v1607, %v1633
        %v1651 = vmul.f32 %v1608, %v1637
        %v1652 = vmul.f32 %v1609, %v1633
        %v1653 = vmul.f32 %v1610, %v1637
        %v1654 = vmul.f32 %v1611, %v1633
        %v1655 = vmul.f32 %v1612, %v1637
        %v1656 = vmul.f32 %v1613, %v1633
        %v1657 = vmul.f32 %v1614, %v1637
        %v1658 = vmul.f32 %v1615, %v1633
        %v1659 = vmul.f32 %v1616, %v1637
        %v1660 = vmul.f32 %v1617, %v1633
        %v1661 = vmul.f32 %v1618, %v1637
        %v1662 = vmul.f32 %v1619, %v1633
        %v1663 = vmul.f32 %v1620, %v1637
        %v1664 = vmul.f32 %v1621, %v1633
        %v1665 = vmul.f32 %v1622, %v1637
        %v1666 = vmul.f32 %v1623, %v1633
        %v1667 = vmul.f32 %v1624, %v1637
        %v1668 = vmul.f32 %v1625, %v1633
        %v1669 = vmul.f32 %v1626, %v1637
        %v1670 = vmul.f32 %v1627, %v1633
        %v1671 = vmul.f32 %v1628, %v1637
        %v1673 = vlaneseq
        %v1674 = vshrl.u32 %v1673, 7
        %v1675 = vsub.s32 0, %v1674
        %v1676 = vrot.slane %v399, %v1675
        %v1677 = vlaneseq
        %v1678 = vshrl.u32 %v1677, 7
        %v1679 = vsub.s32 1, %v1678
        %v1680 = vrot.slane %v399, %v1679
        %v1683 = vadd.f32 %v1640, %v1676
        %v1684 = vadd.f32 %v1641, %v1680
        %v1685 = vadd.f32 %v1642, %v1676
        %v1686 = vadd.f32 %v1643, %v1680
        %v1687 = vadd.f32 %v1644, %v1676
        %v1688 = vadd.f32 %v1645, %v1680
        %v1689 = vadd.f32 %v1646, %v1676
        %v1690 = vadd.f32 %v1647, %v1680
        %v1691 = vadd.f32 %v1648, %v1676
        %v1692 = vadd.f32 %v1649, %v1680
        %v1693 = vadd.f32 %v1650, %v1676
        %v1694 = vadd.f32 %v1651, %v1680
        %v1695 = vadd.f32 %v1652, %v1676
        %v1696 = vadd.f32 %v1653, %v1680
        %v1697 = vadd.f32 %v1654, %v1676
        %v1698 = vadd.f32 %v1655, %v1680
        %v1699 = vadd.f32 %v1656, %v1676
        %v1700 = vadd.f32 %v1657, %v1680
        %v1701 = vadd.f32 %v1658, %v1676
        %v1702 = vadd.f32 %v1659, %v1680
        %v1703 = vadd.f32 %v1660, %v1676
        %v1704 = vadd.f32 %v1661, %v1680
        %v1705 = vadd.f32 %v1662, %v1676
        %v1706 = vadd.f32 %v1663, %v1680
        %v1707 = vadd.f32 %v1664, %v1676
        %v1708 = vadd.f32 %v1665, %v1680
        %v1709 = vadd.f32 %v1666, %v1676
        %v1710 = vadd.f32 %v1667, %v1680
        %v1711 = vadd.f32 %v1668, %v1676
        %v1712 = vadd.f32 %v1669, %v1680
        %v1713 = vadd.f32 %v1670, %v1676
        %v1714 = vadd.f32 %v1671, %v1680
        %v1715 = vmul.f32 %v1683, 0.2
        %v1716 = vmul.f32 %v1684, 0.2
        %v1717 = vmul.f32 %v1685, 0.2
        %v1718 = vmul.f32 %v1686, 0.2
        %v1719 = vmul.f32 %v1687, 0.2
        %v1720 = vmul.f32 %v1688, 0.2
        %v1721 = vmul.f32 %v1689, 0.2
        %v1722 = vmul.f32 %v1690, 0.2
        %v1723 = vmul.f32 %v1691, 0.2
        %v1724 = vmul.f32 %v1692, 0.2
        %v1725 = vmul.f32 %v1693, 0.2
        %v1726 = vmul.f32 %v1694, 0.2
        %v1727 = vmul.f32 %v1695, 0.2
        %v1728 = vmul.f32 %v1696, 0.2
        %v1729 = vmul.f32 %v1697, 0.2
        %v1730 = vmul.f32 %v1698, 0.2
        %v1731 = vmul.f32 %v1699, 0.2
        %v1732 = vmul.f32 %v1700, 0.2
        %v1733 = vmul.f32 %v1701, 0.2
        %v1734 = vmul.f32 %v1702, 0.2
        %v1735 = vmul.f32 %v1703, 0.2
        %v1736 = vmul.f32 %v1704, 0.2
        %v1737 = vmul.f32 %v1705, 0.2
        %v1738 = vmul.f32 %v1706, 0.2
        %v1739 = vmul.f32 %v1707, 0.2
        %v1740 = vmul.f32 %v1708, 0.2
        %v1741 = vmul.f32 %v1709, 0.2
        %v1742 = vmul.f32 %v1710, 0.2
        %v1743 = vmul.f32 %v1711, 0.2
        %v1744 = vmul.f32 %v1712, 0.2
        %v1745 = vmul.f32 %v1713, 0.2
        %v1746 = vmul.f32 %v1714, 0.2
        %v1747 = vmax.f32 %v1683, %v1715
        %v1748 = vmax.f32 %v1684, %v1716
        %v1749 = vmax.f32 %v1685, %v1717
        %v1750 = vmax.f32 %v1686, %v1718
        %v1751 = vmax.f32 %v1687, %v1719
        %v1752 = vmax.f32 %v1688, %v1720
        %v1753 = vmax.f32 %v1689, %v1721
        %v1754 = vmax.f32 %v1690, %v1722
        %v1755 = vmax.f32 %v1691, %v1723
        %v1756 = vmax.f32 %v1692, %v1724
        %v1757 = vmax.f32 %v1693, %v1725
        %v1758 = vmax.f32 %v1694, %v1726
        %v1759 = vmax.f32 %v1695, %v1727
        %v1760 = vmax.f32 %v1696, %v1728
        %v1761 = vmax.f32 %v1697, %v1729
        %v1762 = vmax.f32 %v1698, %v1730
        %v1763 = vmax.f32 %v1699, %v1731
        %v1764 = vmax.f32 %v1700, %v1732
        %v1765 = vmax.f32 %v1701, %v1733
        %v1766 = vmax.f32 %v1702, %v1734
        %v1767 = vmax.f32 %v1703, %v1735
        %v1768 = vmax.f32 %v1704, %v1736
        %v1769 = vmax.f32 %v1705, %v1737
        %v1770 = vmax.f32 %v1706, %v1738
        %v1771 = vmax.f32 %v1707, %v1739
        %v1772 = vmax.f32 %v1708, %v1740
        %v1773 = vmax.f32 %v1709, %v1741
        %v1774 = vmax.f32 %v1710, %v1742
        %v1775 = vmax.f32 %v1711, %v1743
        %v1776 = vmax.f32 %v1712, %v1744
        %v1777 = vmax.f32 %v1713, %v1745
        %v1778 = vmax.f32 %v1714, %v1746
        %v1779 = vpack.c.bf16 %v1749, %v1747
        %v1780 = vpack.c.bf16 %v1750, %v1748
        %v1781 = vpack.c.bf16 %v1753, %v1751
        %v1782 = vpack.c.bf16 %v1754, %v1752
        %v1783 = vpack.c.bf16 %v1757, %v1755
        %v1784 = vpack.c.bf16 %v1758, %v1756
        %v1785 = vpack.c.bf16 %v1761, %v1759
        %v1786 = vpack.c.bf16 %v1762, %v1760
        %v1787 = vpack.c.bf16 %v1765, %v1763
        %v1788 = vpack.c.bf16 %v1766, %v1764
        %v1789 = vpack.c.bf16 %v1769, %v1767
        %v1790 = vpack.c.bf16 %v1770, %v1768
        %v1791 = vpack.c.bf16 %v1773, %v1771
        %v1792 = vpack.c.bf16 %v1774, %v1772
        %v1793 = vpack.c.bf16 %v1777, %v1775
        %v1794 = vpack.c.bf16 %v1778, %v1776
        %v1795 = vld [vmem:[#allocation8] sm:$0xff]
        %v1796 = vld [vmem:[#allocation8 + $0x8] sm:$0xff]
        %v1797 = vld [vmem:[#allocation8 + $0x10] sm:$0xff]
        %v1798 = vld [vmem:[#allocation8 + $0x18] sm:$0xff]
        %v1799 = vld [vmem:[#allocation8 + $0x20] sm:$0xff]
        %v1800 = vld [vmem:[#allocation8 + $0x28] sm:$0xff]
        %v1801 = vld [vmem:[#allocation8 + $0x30] sm:$0xff]
        %v1802 = vld [vmem:[#allocation8 + $0x38] sm:$0xff]
        %v1803 = vld [vmem:[#allocation8 + $0x40] sm:$0xff]
        %v1804 = vld [vmem:[#allocation8 + $0x48] sm:$0xff]
        %v1805 = vld [vmem:[#allocation8 + $0x50] sm:$0xff]
        %v1806 = vld [vmem:[#allocation8 + $0x58] sm:$0xff]
        %v1807 = vld [vmem:[#allocation8 + $0x60] sm:$0xff]
        %v1808 = vld [vmem:[#allocation8 + $0x68] sm:$0xff]
        %v1809 = vld [vmem:[#allocation8 + $0x70] sm:$0xff]
        %v1810 = vld [vmem:[#allocation8 + $0x78] sm:$0xff]
        %v1811 = vld [vmem:[#allocation8 + $0x80] sm:$0xff]
        %v1812 = vld [vmem:[#allocation8 + $0x88] sm:$0xff]
        %v1813 = vld [vmem:[#allocation8 + $0x90] sm:$0xff]
        %v1814 = vld [vmem:[#allocation8 + $0x98] sm:$0xff]
        %v1815 = vld [vmem:[#allocation8 + $0xa0] sm:$0xff]
        %v1816 = vld [vmem:[#allocation8 + $0xa8] sm:$0xff]
        %v1817 = vld [vmem:[#allocation8 + $0xb0] sm:$0xff]
        %v1818 = vld [vmem:[#allocation8 + $0xb8] sm:$0xff]
        %v1819 = vld [vmem:[#allocation8 + $0xc0] sm:$0xff]
        %v1820 = vld [vmem:[#allocation8 + $0xc8] sm:$0xff]
        %v1821 = vld [vmem:[#allocation8 + $0xd0] sm:$0xff]
        %v1822 = vld [vmem:[#allocation8 + $0xd8] sm:$0xff]
        %v1823 = vld [vmem:[#allocation8 + $0xe0] sm:$0xff]
        %v1824 = vld [vmem:[#allocation8 + $0xe8] sm:$0xff]
        %v1825 = vld [vmem:[#allocation8 + $0xf0] sm:$0xff]
        %v1826 = vld [vmem:[#allocation8 + $0xf8] sm:$0xff]
        %v1828 = vlaneseq
        %v1829 = vshrl.u32 %v1828, 7
        %v1830 = vsub.s32 0, %v1829
        %v1831 = vrot.slane %v401, %v1830
        %v1832 = vlaneseq
        %v1833 = vshrl.u32 %v1832, 7
        %v1834 = vsub.s32 1, %v1833
        %v1835 = vrot.slane %v401, %v1834
        %v1870 = vunpack.c.l.b16 %v1795
        %v1871 = vunpack.c.h.b16 %v1795
        %v1872 = vunpack.c.l.b16 %v1796
        %v1873 = vunpack.c.h.b16 %v1796
        %v1874 = vunpack.c.l.b16 %v1797
        %v1875 = vunpack.c.h.b16 %v1797
        %v1876 = vunpack.c.l.b16 %v1798
        %v1877 = vunpack.c.h.b16 %v1798
        %v1878 = vunpack.c.l.b16 %v1799
        %v1879 = vunpack.c.h.b16 %v1799
        %v1880 = vunpack.c.l.b16 %v1800
        %v1881 = vunpack.c.h.b16 %v1800
        %v1882 = vunpack.c.l.b16 %v1801
        %v1883 = vunpack.c.h.b16 %v1801
        %v1884 = vunpack.c.l.b16 %v1802
        %v1885 = vunpack.c.h.b16 %v1802
        %v1886 = vunpack.c.l.b16 %v1803
        %v1887 = vunpack.c.h.b16 %v1803
        %v1888 = vunpack.c.l.b16 %v1804
        %v1889 = vunpack.c.h.b16 %v1804
        %v1890 = vunpack.c.l.b16 %v1805
        %v1891 = vunpack.c.h.b16 %v1805
        %v1892 = vunpack.c.l.b16 %v1806
        %v1893 = vunpack.c.h.b16 %v1806
        %v1894 = vunpack.c.l.b16 %v1807
        %v1895 = vunpack.c.h.b16 %v1807
        %v1896 = vunpack.c.l.b16 %v1808
        %v1897 = vunpack.c.h.b16 %v1808
        %v1898 = vunpack.c.l.b16 %v1809
        %v1899 = vunpack.c.h.b16 %v1809
        %v1900 = vunpack.c.l.b16 %v1810
        %v1901 = vunpack.c.h.b16 %v1810
        %v1902 = vunpack.c.l.b16 %v1811
        %v1903 = vunpack.c.h.b16 %v1811
        %v1904 = vunpack.c.l.b16 %v1812
        %v1905 = vunpack.c.h.b16 %v1812
        %v1906 = vunpack.c.l.b16 %v1813
        %v1907 = vunpack.c.h.b16 %v1813
        %v1908 = vunpack.c.l.b16 %v1814
        %v1909 = vunpack.c.h.b16 %v1814
        %v1910 = vunpack.c.l.b16 %v1815
        %v1911 = vunpack.c.h.b16 %v1815
        %v1912 = vunpack.c.l.b16 %v1816
        %v1913 = vunpack.c.h.b16 %v1816
        %v1914 = vunpack.c.l.b16 %v1817
        %v1915 = vunpack.c.h.b16 %v1817
        %v1916 = vunpack.c.l.b16 %v1818
        %v1917 = vunpack.c.h.b16 %v1818
        %v1918 = vunpack.c.l.b16 %v1819
        %v1919 = vunpack.c.h.b16 %v1819
        %v1920 = vunpack.c.l.b16 %v1820
        %v1921 = vunpack.c.h.b16 %v1820
        %v1922 = vunpack.c.l.b16 %v1821
        %v1923 = vunpack.c.h.b16 %v1821
        %v1924 = vunpack.c.l.b16 %v1822
        %v1925 = vunpack.c.h.b16 %v1822
        %v1926 = vunpack.c.l.b16 %v1823
        %v1927 = vunpack.c.h.b16 %v1823
        %v1928 = vunpack.c.l.b16 %v1824
        %v1929 = vunpack.c.h.b16 %v1824
        %v1930 = vunpack.c.l.b16 %v1825
        %v1931 = vunpack.c.h.b16 %v1825
        %v1932 = vunpack.c.l.b16 %v1826
        %v1933 = vunpack.c.h.b16 %v1826
        %v1934 = vpack.c.b16 %v1872, %v1870
        %v1935 = vpack.c.b16 %v1873, %v1871
        %v1936 = vpack.c.b16 %v1876, %v1874
        %v1937 = vpack.c.b16 %v1877, %v1875
        %v1938 = vpack.c.b16 %v1880, %v1878
        %v1939 = vpack.c.b16 %v1881, %v1879
        %v1940 = vpack.c.b16 %v1884, %v1882
        %v1941 = vpack.c.b16 %v1885, %v1883
        %v1942 = vpack.c.b16 %v1888, %v1886
        %v1943 = vpack.c.b16 %v1889, %v1887
        %v1944 = vpack.c.b16 %v1892, %v1890
        %v1945 = vpack.c.b16 %v1893, %v1891
        %v1946 = vpack.c.b16 %v1896, %v1894
        %v1947 = vpack.c.b16 %v1897, %v1895
        %v1948 = vpack.c.b16 %v1900, %v1898
        %v1949 = vpack.c.b16 %v1901, %v1899
        %v1950 = vpack.c.b16 %v1904, %v1902
        %v1951 = vpack.c.b16 %v1905, %v1903
        %v1952 = vpack.c.b16 %v1908, %v1906
        %v1953 = vpack.c.b16 %v1909, %v1907
        %v1954 = vpack.c.b16 %v1912, %v1910
        %v1955 = vpack.c.b16 %v1913, %v1911
        %v1956 = vpack.c.b16 %v1916, %v1914
        %v1957 = vpack.c.b16 %v1917, %v1915
        %v1958 = vpack.c.b16 %v1920, %v1918
        %v1959 = vpack.c.b16 %v1921, %v1919
        %v1960 = vpack.c.b16 %v1924, %v1922
        %v1961 = vpack.c.b16 %v1925, %v1923
        %v1962 = vpack.c.b16 %v1928, %v1926
        %v1963 = vpack.c.b16 %v1929, %v1927
        %v1964 = vpack.c.b16 %v1932, %v1930
        %v1965 = vpack.c.b16 %v1933, %v1931
        %1998 = vmatprep.subr.bf16.mxu0 %v1935
        %1999 = vmatpush1.bf16.msra.mxu0 %v1934
        %2000 = vmatprep.subr.bf16.mxu0 %v1937
        %2001 = vmatpush1.bf16.msra.mxu0 %v1936
        %2002 = vmatprep.subr.bf16.mxu0 %v1939
        %2003 = vmatpush1.bf16.msra.mxu0 %v1938
        %2004 = vmatprep.subr.bf16.mxu0 %v1941
        %2005 = vmatpush1.bf16.msra.mxu0 %v1940
        %2006 = vmatprep.subr.bf16.mxu0 %v1943
        %2007 = vmatpush1.bf16.msra.mxu0 %v1942
        %2008 = vmatprep.subr.bf16.mxu0 %v1945
        %2009 = vmatpush1.bf16.msra.mxu0 %v1944
        %2010 = vmatprep.subr.bf16.mxu0 %v1947
        %2011 = vmatpush1.bf16.msra.mxu0 %v1946
        %2012 = vmatprep.subr.bf16.mxu0 %v1949
        %2013 = vmatpush1.bf16.msra.mxu0 %v1948
        %2014 = vmatprep.subr.bf16.mxu0 %v1951
        %2015 = vmatpush1.bf16.msra.mxu0 %v1950
        %2016 = vmatprep.subr.bf16.mxu0 %v1953
        %2017 = vmatpush1.bf16.msra.mxu0 %v1952
        %2018 = vmatprep.subr.bf16.mxu0 %v1955
        %2019 = vmatpush1.bf16.msra.mxu0 %v1954
        %2020 = vmatprep.subr.bf16.mxu0 %v1957
        %2021 = vmatpush1.bf16.msra.mxu0 %v1956
        %2022 = vmatprep.subr.bf16.mxu0 %v1959
        %2023 = vmatpush1.bf16.msra.mxu0 %v1958
        %2024 = vmatprep.subr.bf16.mxu0 %v1961
        %2025 = vmatpush1.bf16.msra.mxu0 %v1960
        %2026 = vmatprep.subr.bf16.mxu0 %v1963
        %2027 = vmatpush1.bf16.msra.mxu0 %v1962
        %2028 = vmatprep.subr.bf16.mxu0 %v1965
        %2029 = vmatpush1.bf16.msra.mxu0 %v1964
        %2030 = vmatprep.mubr.bf16.mxu0 %v1780
        %2031 = vmatmul.mubr.bf16.gmra.mrb[0].mxu0 %v1779
        %v2032 = vpop.f32.mrb[0].mxu0
        %v2033 = vadd.f32 %v1831, %v2032
        %v2034 = vpop.f32.mrb[0].mxu0
        %v2035 = vadd.f32 %v1835, %v2034
        %v2036 = vpop.f32.mrb[0].mxu0
        %v2037 = vadd.f32 %v1831, %v2036
        %v2038 = vpop.f32.mrb[0].mxu0
        %v2039 = vadd.f32 %v1835, %v2038
        %2040 = vmatprep.mubr.bf16.mxu0 %v1782
        %2041 = vmatmul.mubr.bf16.gmra.mrb[0].mxu0 %v1781
        %v2042 = vpop.f32.mrb[0].mxu0
        %v2043 = vadd.f32 %v1831, %v2042
        %v2044 = vpop.f32.mrb[0].mxu0
        %v2045 = vadd.f32 %v1835, %v2044
        %v2046 = vpop.f32.mrb[0].mxu0
        %v2047 = vadd.f32 %v1831, %v2046
        %v2048 = vpop.f32.mrb[0].mxu0
        %v2049 = vadd.f32 %v1835, %v2048
        %2050 = vmatprep.mubr.bf16.mxu0 %v1784
        %2051 = vmatmul.mubr.bf16.gmra.mrb[0].mxu0 %v1783
        %v2052 = vpop.f32.mrb[0].mxu0
        %v2053 = vadd.f32 %v1831, %v2052
        %v2054 = vpop.f32.mrb[0].mxu0
        %v2055 = vadd.f32 %v1835, %v2054
        %v2056 = vpop.f32.mrb[0].mxu0
        %v2057 = vadd.f32 %v1831, %v2056
        %v2058 = vpop.f32.mrb[0].mxu0
        %v2059 = vadd.f32 %v1835, %v2058
        %2060 = vmatprep.mubr.bf16.mxu0 %v1786
        %2061 = vmatmul.mubr.bf16.gmra.mrb[0].mxu0 %v1785
        %v2062 = vpop.f32.mrb[0].mxu0
        %v2063 = vadd.f32 %v1831, %v2062
        %v2064 = vpop.f32.mrb[0].mxu0
        %v2065 = vadd.f32 %v1835, %v2064
        %v2066 = vpop.f32.mrb[0].mxu0
        %v2067 = vadd.f32 %v1831, %v2066
        %v2068 = vpop.f32.mrb[0].mxu0
        %v2069 = vadd.f32 %v1835, %v2068
        %2070 = vmatprep.mubr.bf16.mxu0 %v1788
        %2071 = vmatmul.mubr.bf16.gmra.mrb[0].mxu0 %v1787
        %v2072 = vpop.f32.mrb[0].mxu0
        %v2073 = vadd.f32 %v1831, %v2072
        %v2074 = vpop.f32.mrb[0].mxu0
        %v2075 = vadd.f32 %v1835, %v2074
        %v2076 = vpop.f32.mrb[0].mxu0
        %v2077 = vadd.f32 %v1831, %v2076
        %v2078 = vpop.f32.mrb[0].mxu0
        %v2079 = vadd.f32 %v1835, %v2078
        %2080 = vmatprep.mubr.bf16.mxu0 %v1790
        %2081 = vmatmul.mubr.bf16.gmra.mrb[0].mxu0 %v1789
        %v2082 = vpop.f32.mrb[0].mxu0
        %v2083 = vadd.f32 %v1831, %v2082
        %v2084 = vpop.f32.mrb[0].mxu0
        %v2085 = vadd.f32 %v1835, %v2084
        %v2086 = vpop.f32.mrb[0].mxu0
        %v2087 = vadd.f32 %v1831, %v2086
        %v2088 = vpop.f32.mrb[0].mxu0
        %v2089 = vadd.f32 %v1835, %v2088
        %2090 = vmatprep.mubr.bf16.mxu0 %v1792
        %2091 = vmatmul.mubr.bf16.gmra.mrb[0].mxu0 %v1791
        %v2092 = vpop.f32.mrb[0].mxu0
        %v2093 = vadd.f32 %v1831, %v2092
        %v2094 = vpop.f32.mrb[0].mxu0
        %v2095 = vadd.f32 %v1835, %v2094
        %v2096 = vpop.f32.mrb[0].mxu0
        %v2097 = vadd.f32 %v1831, %v2096
        %v2098 = vpop.f32.mrb[0].mxu0
        %v2099 = vadd.f32 %v1835, %v2098
        %2100 = vmatprep.mubr.bf16.mxu0 %v1794
        %2101 = vmatmul.mubr.bf16.gmra.mrb[0].mxu0 %v1793
        %v2102 = vpop.f32.mrb[0].mxu0
        %v2103 = vadd.f32 %v1831, %v2102
        %v2104 = vpop.f32.mrb[0].mxu0
        %v2105 = vadd.f32 %v1835, %v2104
        %v2106 = vpop.f32.mrb[0].mxu0
        %v2107 = vadd.f32 %v1831, %v2106
        %v2108 = vpop.f32.mrb[0].mxu0
        %v2109 = vadd.f32 %v1835, %v2108
        %2110 = vdwg.mxu0
        %v2111 = vadd.f32 %v2033, %v2035
        %2112 = vadd.xlane.f32.xlu0 %v2111
        %v2113 = vpop.xlane.xlu0 %2112
        %v2114 = vadd.f32 %v2037, %v2039
        %2115 = vadd.xlane.f32.xlu0 %v2114
        %v2116 = vpop.xlane.xlu0 %2115
        %v2117 = vadd.f32 %v2043, %v2045
        %2118 = vadd.xlane.f32.xlu0 %v2117
        %v2119 = vpop.xlane.xlu0 %2118
        %v2120 = vadd.f32 %v2047, %v2049
        %2121 = vadd.xlane.f32.xlu0 %v2120
        %v2122 = vpop.xlane.xlu0 %2121
        %v2123 = vadd.f32 %v2053, %v2055
        %2124 = vadd.xlane.f32.xlu0 %v2123
        %v2125 = vpop.xlane.xlu0 %2124
        %v2126 = vadd.f32 %v2057, %v2059
        %2127 = vadd.xlane.f32.xlu0 %v2126
        %v2128 = vpop.xlane.xlu0 %2127
        %v2129 = vadd.f32 %v2063, %v2065
        %2130 = vadd.xlane.f32.xlu0 %v2129
        %v2131 = vpop.xlane.xlu0 %2130
        %v2132 = vadd.f32 %v2067, %v2069
        %2133 = vadd.xlane.f32.xlu0 %v2132
        %v2134 = vpop.xlane.xlu0 %2133
        %v2135 = vadd.f32 %v2073, %v2075
        %2136 = vadd.xlane.f32.xlu0 %v2135
        %v2137 = vpop.xlane.xlu0 %2136
        %v2138 = vadd.f32 %v2077, %v2079
        %2139 = vadd.xlane.f32.xlu0 %v2138
        %v2140 = vpop.xlane.xlu0 %2139
        %v2141 = vadd.f32 %v2083, %v2085
        %2142 = vadd.xlane.f32.xlu0 %v2141
        %v2143 = vpop.xlane.xlu0 %2142
        %v2144 = vadd.f32 %v2087, %v2089
        %2145 = vadd.xlane.f32.xlu0 %v2144
        %v2146 = vpop.xlane.xlu0 %2145
        %v2147 = vadd.f32 %v2093, %v2095
        %2148 = vadd.xlane.f32.xlu0 %v2147
        %v2149 = vpop.xlane.xlu0 %2148
        %v2150 = vadd.f32 %v2097, %v2099
        %2151 = vadd.xlane.f32.xlu0 %v2150
        %v2152 = vpop.xlane.xlu0 %2151
        %v2153 = vadd.f32 %v2103, %v2105
        %2154 = vadd.xlane.f32.xlu0 %v2153
        %v2155 = vpop.xlane.xlu0 %2154
        %v2156 = vadd.f32 %v2107, %v2109
        %2157 = vadd.xlane.f32.xlu0 %v2156
        %v2158 = vpop.xlane.xlu0 %2157
        %v2159 = vmul.f32 %v2113, %v682
        %v2160 = vmul.f32 %v2116, %v682
        %v2161 = vmul.f32 %v2119, %v682
        %v2162 = vmul.f32 %v2122, %v682
        %v2163 = vmul.f32 %v2125, %v682
        %v2164 = vmul.f32 %v2128, %v682
        %v2165 = vmul.f32 %v2131, %v682
        %v2166 = vmul.f32 %v2134, %v682
        %v2167 = vmul.f32 %v2137, %v682
        %v2168 = vmul.f32 %v2140, %v682
        %v2169 = vmul.f32 %v2143, %v682
        %v2170 = vmul.f32 %v2146, %v682
        %v2171 = vmul.f32 %v2149, %v682
        %v2172 = vmul.f32 %v2152, %v682
        %v2173 = vmul.f32 %v2155, %v682
        %v2174 = vmul.f32 %v2158, %v682
        %v2175 = vsub.f32 %v2033, %v2159
        %v2176 = vsub.f32 %v2035, %v2159
        %v2177 = vsub.f32 %v2037, %v2160
        %v2178 = vsub.f32 %v2039, %v2160
        %v2179 = vsub.f32 %v2043, %v2161
        %v2180 = vsub.f32 %v2045, %v2161
        %v2181 = vsub.f32 %v2047, %v2162
        %v2182 = vsub.f32 %v2049, %v2162
        %v2183 = vsub.f32 %v2053, %v2163
        %v2184 = vsub.f32 %v2055, %v2163
        %v2185 = vsub.f32 %v2057, %v2164
        %v2186 = vsub.f32 %v2059, %v2164
        %v2187 = vsub.f32 %v2063, %v2165
        %v2188 = vsub.f32 %v2065, %v2165
        %v2189 = vsub.f32 %v2067, %v2166
        %v2190 = vsub.f32 %v2069, %v2166
        %v2191 = vsub.f32 %v2073, %v2167
        %v2192 = vsub.f32 %v2075, %v2167
        %v2193 = vsub.f32 %v2077, %v2168
        %v2194 = vsub.f32 %v2079, %v2168
        %v2195 = vsub.f32 %v2083, %v2169
        %v2196 = vsub.f32 %v2085, %v2169
        %v2197 = vsub.f32 %v2087, %v2170
        %v2198 = vsub.f32 %v2089, %v2170
        %v2199 = vsub.f32 %v2093, %v2171
        %v2200 = vsub.f32 %v2095, %v2171
        %v2201 = vsub.f32 %v2097, %v2172
        %v2202 = vsub.f32 %v2099, %v2172
        %v2203 = vsub.f32 %v2103, %v2173
        %v2204 = vsub.f32 %v2105, %v2173
        %v2205 = vsub.f32 %v2107, %v2174
        %v2206 = vsub.f32 %v2109, %v2174
        %v2207 = vmul.f32 %v2175, %v2175
        %v2208 = vmul.f32 %v2176, %v2176
        %v2209 = vmul.f32 %v2177, %v2177
        %v2210 = vmul.f32 %v2178, %v2178
        %v2211 = vmul.f32 %v2179, %v2179
        %v2212 = vmul.f32 %v2180, %v2180
        %v2213 = vmul.f32 %v2181, %v2181
        %v2214 = vmul.f32 %v2182, %v2182
        %v2215 = vmul.f32 %v2183, %v2183
        %v2216 = vmul.f32 %v2184, %v2184
        %v2217 = vmul.f32 %v2185, %v2185
        %v2218 = vmul.f32 %v2186, %v2186
        %v2219 = vmul.f32 %v2187, %v2187
        %v2220 = vmul.f32 %v2188, %v2188
        %v2221 = vmul.f32 %v2189, %v2189
        %v2222 = vmul.f32 %v2190, %v2190
        %v2223 = vmul.f32 %v2191, %v2191
        %v2224 = vmul.f32 %v2192, %v2192
        %v2225 = vmul.f32 %v2193, %v2193
        %v2226 = vmul.f32 %v2194, %v2194
        %v2227 = vmul.f32 %v2195, %v2195
        %v2228 = vmul.f32 %v2196, %v2196
        %v2229 = vmul.f32 %v2197, %v2197
        %v2230 = vmul.f32 %v2198, %v2198
        %v2231 = vmul.f32 %v2199, %v2199
        %v2232 = vmul.f32 %v2200, %v2200
        %v2233 = vmul.f32 %v2201, %v2201
        %v2234 = vmul.f32 %v2202, %v2202
        %v2235 = vmul.f32 %v2203, %v2203
        %v2236 = vmul.f32 %v2204, %v2204
        %v2237 = vmul.f32 %v2205, %v2205
        %v2238 = vmul.f32 %v2206, %v2206
        %v2239 = vadd.f32 %v2207, %v2208
        %2240 = vadd.xlane.f32.xlu0 %v2239
        %v2241 = vpop.xlane.xlu0 %2240
        %v2242 = vadd.f32 %v2209, %v2210
        %2243 = vadd.xlane.f32.xlu0 %v2242
        %v2244 = vpop.xlane.xlu0 %2243
        %v2245 = vadd.f32 %v2211, %v2212
        %2246 = vadd.xlane.f32.xlu0 %v2245
        %v2247 = vpop.xlane.xlu0 %2246
        %v2248 = vadd.f32 %v2213, %v2214
        %2249 = vadd.xlane.f32.xlu0 %v2248
        %v2250 = vpop.xlane.xlu0 %2249
        %v2251 = vadd.f32 %v2215, %v2216
        %2252 = vadd.xlane.f32.xlu0 %v2251
        %v2253 = vpop.xlane.xlu0 %2252
        %v2254 = vadd.f32 %v2217, %v2218
        %2255 = vadd.xlane.f32.xlu0 %v2254
        %v2256 = vpop.xlane.xlu0 %2255
        %v2257 = vadd.f32 %v2219, %v2220
        %2258 = vadd.xlane.f32.xlu0 %v2257
        %v2259 = vpop.xlane.xlu0 %2258
        %v2260 = vadd.f32 %v2221, %v2222
        %2261 = vadd.xlane.f32.xlu0 %v2260
        %v2262 = vpop.xlane.xlu0 %2261
        %v2263 = vadd.f32 %v2223, %v2224
        %2264 = vadd.xlane.f32.xlu0 %v2263
        %v2265 = vpop.xlane.xlu0 %2264
        %v2266 = vadd.f32 %v2225, %v2226
        %2267 = vadd.xlane.f32.xlu0 %v2266
        %v2268 = vpop.xlane.xlu0 %2267
        %v2269 = vadd.f32 %v2227, %v2228
        %2270 = vadd.xlane.f32.xlu0 %v2269
        %v2271 = vpop.xlane.xlu0 %2270
        %v2272 = vadd.f32 %v2229, %v2230
        %2273 = vadd.xlane.f32.xlu0 %v2272
        %v2274 = vpop.xlane.xlu0 %2273
        %v2275 = vadd.f32 %v2231, %v2232
        %2276 = vadd.xlane.f32.xlu0 %v2275
        %v2277 = vpop.xlane.xlu0 %2276
        %v2278 = vadd.f32 %v2233, %v2234
        %2279 = vadd.xlane.f32.xlu0 %v2278
        %v2280 = vpop.xlane.xlu0 %2279
        %v2281 = vadd.f32 %v2235, %v2236
        %2282 = vadd.xlane.f32.xlu0 %v2281
        %v2283 = vpop.xlane.xlu0 %2282
        %v2284 = vadd.f32 %v2237, %v2238
        %2285 = vadd.xlane.f32.xlu0 %v2284
        %v2286 = vpop.xlane.xlu0 %2285
        %v2287 = vmul.f32 %v2241, %v682
        %v2288 = vmul.f32 %v2244, %v682
        %v2289 = vmul.f32 %v2247, %v682
        %v2290 = vmul.f32 %v2250, %v682
        %v2291 = vmul.f32 %v2253, %v682
        %v2292 = vmul.f32 %v2256, %v682
        %v2293 = vmul.f32 %v2259, %v682
        %v2294 = vmul.f32 %v2262, %v682
        %v2295 = vmul.f32 %v2265, %v682
        %v2296 = vmul.f32 %v2268, %v682
        %v2297 = vmul.f32 %v2271, %v682
        %v2298 = vmul.f32 %v2274, %v682
        %v2299 = vmul.f32 %v2277, %v682
        %v2300 = vmul.f32 %v2280, %v682
        %v2301 = vmul.f32 %v2283, %v682
        %v2302 = vmul.f32 %v2286, %v682
        %v2303 = vadd.f32 %v2287, 1e-05
        %v2304 = vadd.f32 %v2288, 1e-05
        %v2305 = vadd.f32 %v2289, 1e-05
        %v2306 = vadd.f32 %v2290, 1e-05
        %v2307 = vadd.f32 %v2291, 1e-05
        %v2308 = vadd.f32 %v2292, 1e-05
        %v2309 = vadd.f32 %v2293, 1e-05
        %v2310 = vadd.f32 %v2294, 1e-05
        %v2311 = vadd.f32 %v2295, 1e-05
        %v2312 = vadd.f32 %v2296, 1e-05
        %v2313 = vadd.f32 %v2297, 1e-05
        %v2314 = vadd.f32 %v2298, 1e-05
        %v2315 = vadd.f32 %v2299, 1e-05
        %v2316 = vadd.f32 %v2300, 1e-05
        %v2317 = vadd.f32 %v2301, 1e-05
        %v2318 = vadd.f32 %v2302, 1e-05
        %v2319 = vrsqrt.pop %v2303
        %v2320 = vrsqrt.pop %v2304
        %v2321 = vrsqrt.pop %v2305
        %v2322 = vrsqrt.pop %v2306
        %v2323 = vrsqrt.pop %v2307
        %v2324 = vrsqrt.pop %v2308
        %v2325 = vrsqrt.pop %v2309
        %v2326 = vrsqrt.pop %v2310
        %v2327 = vrsqrt.pop %v2311
        %v2328 = vrsqrt.pop %v2312
        %v2329 = vrsqrt.pop %v2313
        %v2330 = vrsqrt.pop %v2314
        %v2331 = vrsqrt.pop %v2315
        %v2332 = vrsqrt.pop %v2316
        %v2333 = vrsqrt.pop %v2317
        %v2334 = vrsqrt.pop %v2318
        %v2335 = vmul.f32 %v2175, %v2319
        %v2336 = vmul.f32 %v2176, %v2319
        %v2337 = vmul.f32 %v2177, %v2320
        %v2338 = vmul.f32 %v2178, %v2320
        %v2339 = vmul.f32 %v2179, %v2321
        %v2340 = vmul.f32 %v2180, %v2321
        %v2341 = vmul.f32 %v2181, %v2322
        %v2342 = vmul.f32 %v2182, %v2322
        %v2343 = vmul.f32 %v2183, %v2323
        %v2344 = vmul.f32 %v2184, %v2323
        %v2345 = vmul.f32 %v2185, %v2324
        %v2346 = vmul.f32 %v2186, %v2324
        %v2347 = vmul.f32 %v2187, %v2325
        %v2348 = vmul.f32 %v2188, %v2325
        %v2349 = vmul.f32 %v2189, %v2326
        %v2350 = vmul.f32 %v2190, %v2326
        %v2351 = vmul.f32 %v2191, %v2327
        %v2352 = vmul.f32 %v2192, %v2327
        %v2353 = vmul.f32 %v2193, %v2328
        %v2354 = vmul.f32 %v2194, %v2328
        %v2355 = vmul.f32 %v2195, %v2329
        %v2356 = vmul.f32 %v2196, %v2329
        %v2357 = vmul.f32 %v2197, %v2330
        %v2358 = vmul.f32 %v2198, %v2330
        %v2359 = vmul.f32 %v2199, %v2331
        %v2360 = vmul.f32 %v2200, %v2331
        %v2361 = vmul.f32 %v2201, %v2332
        %v2362 = vmul.f32 %v2202, %v2332
        %v2363 = vmul.f32 %v2203, %v2333
        %v2364 = vmul.f32 %v2204, %v2333
        %v2365 = vmul.f32 %v2205, %v2334
        %v2366 = vmul.f32 %v2206, %v2334
        %v2368 = vlaneseq
        %v2369 = vshrl.u32 %v2368, 7
        %v2370 = vsub.s32 0, %v2369
        %v2371 = vrot.slane %v403, %v2370
        %v2372 = vlaneseq
        %v2373 = vshrl.u32 %v2372, 7
        %v2374 = vsub.s32 1, %v2373
        %v2375 = vrot.slane %v403, %v2374
        %v2378 = vmul.f32 %v2335, %v2371
        %v2379 = vmul.f32 %v2336, %v2375
        %v2380 = vmul.f32 %v2337, %v2371
        %v2381 = vmul.f32 %v2338, %v2375
        %v2382 = vmul.f32 %v2339, %v2371
        %v2383 = vmul.f32 %v2340, %v2375
        %v2384 = vmul.f32 %v2341, %v2371
        %v2385 = vmul.f32 %v2342, %v2375
        %v2386 = vmul.f32 %v2343, %v2371
        %v2387 = vmul.f32 %v2344, %v2375
        %v2388 = vmul.f32 %v2345, %v2371
        %v2389 = vmul.f32 %v2346, %v2375
        %v2390 = vmul.f32 %v2347, %v2371
        %v2391 = vmul.f32 %v2348, %v2375
        %v2392 = vmul.f32 %v2349, %v2371
        %v2393 = vmul.f32 %v2350, %v2375
        %v2394 = vmul.f32 %v2351, %v2371
        %v2395 = vmul.f32 %v2352, %v2375
        %v2396 = vmul.f32 %v2353, %v2371
        %v2397 = vmul.f32 %v2354, %v2375
        %v2398 = vmul.f32 %v2355, %v2371
        %v2399 = vmul.f32 %v2356, %v2375
        %v2400 = vmul.f32 %v2357, %v2371
        %v2401 = vmul.f32 %v2358, %v2375
        %v2402 = vmul.f32 %v2359, %v2371
        %v2403 = vmul.f32 %v2360, %v2375
        %v2404 = vmul.f32 %v2361, %v2371
        %v2405 = vmul.f32 %v2362, %v2375
        %v2406 = vmul.f32 %v2363, %v2371
        %v2407 = vmul.f32 %v2364, %v2375
        %v2408 = vmul.f32 %v2365, %v2371
        %v2409 = vmul.f32 %v2366, %v2375
        %v2411 = vlaneseq
        %v2412 = vshrl.u32 %v2411, 7
        %v2413 = vsub.s32 0, %v2412
        %v2414 = vrot.slane %v405, %v2413
        %v2415 = vlaneseq
        %v2416 = vshrl.u32 %v2415, 7
        %v2417 = vsub.s32 1, %v2416
        %v2418 = vrot.slane %v405, %v2417
        %v2421 = vadd.f32 %v2378, %v2414
        %v2422 = vadd.f32 %v2379, %v2418
        %v2423 = vadd.f32 %v2380, %v2414
        %v2424 = vadd.f32 %v2381, %v2418
        %v2425 = vadd.f32 %v2382, %v2414
        %v2426 = vadd.f32 %v2383, %v2418
        %v2427 = vadd.f32 %v2384, %v2414
        %v2428 = vadd.f32 %v2385, %v2418
        %v2429 = vadd.f32 %v2386, %v2414
        %v2430 = vadd.f32 %v2387, %v2418
        %v2431 = vadd.f32 %v2388, %v2414
        %v2432 = vadd.f32 %v2389, %v2418
        %v2433 = vadd.f32 %v2390, %v2414
        %v2434 = vadd.f32 %v2391, %v2418
        %v2435 = vadd.f32 %v2392, %v2414
        %v2436 = vadd.f32 %v2393, %v2418
        %v2437 = vadd.f32 %v2394, %v2414
        %v2438 = vadd.f32 %v2395, %v2418
        %v2439 = vadd.f32 %v2396, %v2414
        %v2440 = vadd.f32 %v2397, %v2418
        %v2441 = vadd.f32 %v2398, %v2414
        %v2442 = vadd.f32 %v2399, %v2418
        %v2443 = vadd.f32 %v2400, %v2414
        %v2444 = vadd.f32 %v2401, %v2418
        %v2445 = vadd.f32 %v2402, %v2414
        %v2446 = vadd.f32 %v2403, %v2418
        %v2447 = vadd.f32 %v2404, %v2414
        %v2448 = vadd.f32 %v2405, %v2418
        %v2449 = vadd.f32 %v2406, %v2414
        %v2450 = vadd.f32 %v2407, %v2418
        %v2451 = vadd.f32 %v2408, %v2414
        %v2452 = vadd.f32 %v2409, %v2418
        %v2453 = vmul.f32 %v2421, 0.2
        %v2454 = vmul.f32 %v2422, 0.2
        %v2455 = vmul.f32 %v2423, 0.2
        %v2456 = vmul.f32 %v2424, 0.2
        %v2457 = vmul.f32 %v2425, 0.2
        %v2458 = vmul.f32 %v2426, 0.2
        %v2459 = vmul.f32 %v2427, 0.2
        %v2460 = vmul.f32 %v2428, 0.2
        %v2461 = vmul.f32 %v2429, 0.2
        %v2462 = vmul.f32 %v2430, 0.2
        %v2463 = vmul.f32 %v2431, 0.2
        %v2464 = vmul.f32 %v2432, 0.2
        %v2465 = vmul.f32 %v2433, 0.2
        %v2466 = vmul.f32 %v2434, 0.2
        %v2467 = vmul.f32 %v2435, 0.2
        %v2468 = vmul.f32 %v2436, 0.2
        %v2469 = vmul.f32 %v2437, 0.2
        %v2470 = vmul.f32 %v2438, 0.2
        %v2471 = vmul.f32 %v2439, 0.2
        %v2472 = vmul.f32 %v2440, 0.2
        %v2473 = vmul.f32 %v2441, 0.2
        %v2474 = vmul.f32 %v2442, 0.2
        %v2475 = vmul.f32 %v2443, 0.2
        %v2476 = vmul.f32 %v2444, 0.2
        %v2477 = vmul.f32 %v2445, 0.2
        %v2478 = vmul.f32 %v2446, 0.2
        %v2479 = vmul.f32 %v2447, 0.2
        %v2480 = vmul.f32 %v2448, 0.2
        %v2481 = vmul.f32 %v2449, 0.2
        %v2482 = vmul.f32 %v2450, 0.2
        %v2483 = vmul.f32 %v2451, 0.2
        %v2484 = vmul.f32 %v2452, 0.2
        %v2485 = vmax.f32 %v2421, %v2453
        %v2486 = vmax.f32 %v2422, %v2454
        %v2487 = vmax.f32 %v2423, %v2455
        %v2488 = vmax.f32 %v2424, %v2456
        %v2489 = vmax.f32 %v2425, %v2457
        %v2490 = vmax.f32 %v2426, %v2458
        %v2491 = vmax.f32 %v2427, %v2459
        %v2492 = vmax.f32 %v2428, %v2460
        %v2493 = vmax.f32 %v2429, %v2461
        %v2494 = vmax.f32 %v2430, %v2462
        %v2495 = vmax.f32 %v2431, %v2463
        %v2496 = vmax.f32 %v2432, %v2464
        %v2497 = vmax.f32 %v2433, %v2465
        %v2498 = vmax.f32 %v2434, %v2466
        %v2499 = vmax.f32 %v2435, %v2467
        %v2500 = vmax.f32 %v2436, %v2468
        %v2501 = vmax.f32 %v2437, %v2469
        %v2502 = vmax.f32 %v2438, %v2470
        %v2503 = vmax.f32 %v2439, %v2471
        %v2504 = vmax.f32 %v2440, %v2472
        %v2505 = vmax.f32 %v2441, %v2473
        %v2506 = vmax.f32 %v2442, %v2474
        %v2507 = vmax.f32 %v2443, %v2475
        %v2508 = vmax.f32 %v2444, %v2476
        %v2509 = vmax.f32 %v2445, %v2477
        %v2510 = vmax.f32 %v2446, %v2478
        %v2511 = vmax.f32 %v2447, %v2479
        %v2512 = vmax.f32 %v2448, %v2480
        %v2513 = vmax.f32 %v2449, %v2481
        %v2514 = vmax.f32 %v2450, %v2482
        %v2515 = vmax.f32 %v2451, %v2483
        %v2516 = vmax.f32 %v2452, %v2484
        %v2517 = vpack.c.bf16 %v2487, %v2485
        %v2518 = vpack.c.bf16 %v2488, %v2486
        %v2519 = vpack.c.bf16 %v2491, %v2489
        %v2520 = vpack.c.bf16 %v2492, %v2490
        %v2521 = vpack.c.bf16 %v2495, %v2493
        %v2522 = vpack.c.bf16 %v2496, %v2494
        %v2523 = vpack.c.bf16 %v2499, %v2497
        %v2524 = vpack.c.bf16 %v2500, %v2498
        %v2525 = vpack.c.bf16 %v2503, %v2501
        %v2526 = vpack.c.bf16 %v2504, %v2502
        %v2527 = vpack.c.bf16 %v2507, %v2505
        %v2528 = vpack.c.bf16 %v2508, %v2506
        %v2529 = vpack.c.bf16 %v2511, %v2509
        %v2530 = vpack.c.bf16 %v2512, %v2510
        %v2531 = vpack.c.bf16 %v2515, %v2513
        %v2532 = vpack.c.bf16 %v2516, %v2514
        %v2533 = vld [vmem:[#allocation10] sm:$0xf]
        %v2534 = vld [vmem:[#allocation10 + $0x4] sm:$0xf]
        %v2535 = vld [vmem:[#allocation10 + $0x8] sm:$0xf]
        %v2536 = vld [vmem:[#allocation10 + $0xc] sm:$0xf]
        %v2537 = vld [vmem:[#allocation10 + $0x10] sm:$0xf]
        %v2538 = vld [vmem:[#allocation10 + $0x14] sm:$0xf]
        %v2539 = vld [vmem:[#allocation10 + $0x18] sm:$0xf]
        %v2540 = vld [vmem:[#allocation10 + $0x1c] sm:$0xf]
        %v2541 = vld [vmem:[#allocation10 + $0x20] sm:$0xf]
        %v2542 = vld [vmem:[#allocation10 + $0x24] sm:$0xf]
        %v2543 = vld [vmem:[#allocation10 + $0x28] sm:$0xf]
        %v2544 = vld [vmem:[#allocation10 + $0x2c] sm:$0xf]
        %v2545 = vld [vmem:[#allocation10 + $0x30] sm:$0xf]
        %v2546 = vld [vmem:[#allocation10 + $0x34] sm:$0xf]
        %v2547 = vld [vmem:[#allocation10 + $0x38] sm:$0xf]
        %v2548 = vld [vmem:[#allocation10 + $0x3c] sm:$0xf]
        %v2549 = vld [vmem:[#allocation10 + $0x40] sm:$0xf]
        %v2550 = vld [vmem:[#allocation10 + $0x44] sm:$0xf]
        %v2551 = vld [vmem:[#allocation10 + $0x48] sm:$0xf]
        %v2552 = vld [vmem:[#allocation10 + $0x4c] sm:$0xf]
        %v2553 = vld [vmem:[#allocation10 + $0x50] sm:$0xf]
        %v2554 = vld [vmem:[#allocation10 + $0x54] sm:$0xf]
        %v2555 = vld [vmem:[#allocation10 + $0x58] sm:$0xf]
        %v2556 = vld [vmem:[#allocation10 + $0x5c] sm:$0xf]
        %v2557 = vld [vmem:[#allocation10 + $0x60] sm:$0xf]
        %v2558 = vld [vmem:[#allocation10 + $0x64] sm:$0xf]
        %v2559 = vld [vmem:[#allocation10 + $0x68] sm:$0xf]
        %v2560 = vld [vmem:[#allocation10 + $0x6c] sm:$0xf]
        %v2561 = vld [vmem:[#allocation10 + $0x70] sm:$0xf]
        %v2562 = vld [vmem:[#allocation10 + $0x74] sm:$0xf]
        %v2563 = vld [vmem:[#allocation10 + $0x78] sm:$0xf]
        %v2564 = vld [vmem:[#allocation10 + $0x7c] sm:$0xf]
        %v2565 = vld [vmem:[%s6] sm:$0x1]
        %v2567 = vlaneseq
        %v2568 = vshrl.u32 %v2567, 7
        %v2569 = vsub.s32 0, %v2568
        %v2570 = vrot.slane %v2565, %v2569
        %v2604 = vunpack.c.l.b16 %v2533
        %v2605 = vunpack.c.l.b16 %v2534
        %v2606 = vunpack.c.l.b16 %v2535
        %v2607 = vunpack.c.l.b16 %v2536
        %v2608 = vunpack.c.l.b16 %v2537
        %v2609 = vunpack.c.l.b16 %v2538
        %v2610 = vunpack.c.l.b16 %v2539
        %v2611 = vunpack.c.l.b16 %v2540
        %v2612 = vunpack.c.l.b16 %v2541
        %v2613 = vunpack.c.l.b16 %v2542
        %v2614 = vunpack.c.l.b16 %v2543
        %v2615 = vunpack.c.l.b16 %v2544
        %v2616 = vunpack.c.l.b16 %v2545
        %v2617 = vunpack.c.l.b16 %v2546
        %v2618 = vunpack.c.l.b16 %v2547
        %v2619 = vunpack.c.l.b16 %v2548
        %v2620 = vunpack.c.l.b16 %v2549
        %v2621 = vunpack.c.l.b16 %v2550
        %v2622 = vunpack.c.l.b16 %v2551
        %v2623 = vunpack.c.l.b16 %v2552
        %v2624 = vunpack.c.l.b16 %v2553
        %v2625 = vunpack.c.l.b16 %v2554
        %v2626 = vunpack.c.l.b16 %v2555
        %v2627 = vunpack.c.l.b16 %v2556
        %v2628 = vunpack.c.l.b16 %v2557
        %v2629 = vunpack.c.l.b16 %v2558
        %v2630 = vunpack.c.l.b16 %v2559
        %v2631 = vunpack.c.l.b16 %v2560
        %v2632 = vunpack.c.l.b16 %v2561
        %v2633 = vunpack.c.l.b16 %v2562
        %v2634 = vunpack.c.l.b16 %v2563
        %v2635 = vunpack.c.l.b16 %v2564
        %v2636 = vpack.c.b16 %v2605, %v2604
        %v2637 = vpack.c.b16 %v2607, %v2606
        %v2638 = vpack.c.b16 %v2609, %v2608
        %v2639 = vpack.c.b16 %v2611, %v2610
        %v2640 = vpack.c.b16 %v2613, %v2612
        %v2641 = vpack.c.b16 %v2615, %v2614
        %v2642 = vpack.c.b16 %v2617, %v2616
        %v2643 = vpack.c.b16 %v2619, %v2618
        %v2644 = vpack.c.b16 %v2621, %v2620
        %v2645 = vpack.c.b16 %v2623, %v2622
        %v2646 = vpack.c.b16 %v2625, %v2624
        %v2647 = vpack.c.b16 %v2627, %v2626
        %v2648 = vpack.c.b16 %v2629, %v2628
        %v2649 = vpack.c.b16 %v2631, %v2630
        %v2650 = vpack.c.b16 %v2633, %v2632
        %v2651 = vpack.c.b16 %v2635, %v2634
        %2668 = vmatprep.subr.bf16.mxu0 0
        %2669 = vmatpush1.bf16.msra.mxu0 %v2636
        %2670 = vmatprep.subr.bf16.mxu0 0
        %2671 = vmatpush1.bf16.msra.mxu0 %v2637
        %2672 = vmatprep.subr.bf16.mxu0 0
        %2673 = vmatpush1.bf16.msra.mxu0 %v2638
        %2674 = vmatprep.subr.bf16.mxu0 0
        %2675 = vmatpush1.bf16.msra.mxu0 %v2639
        %2676 = vmatprep.subr.bf16.mxu0 0
        %2677 = vmatpush1.bf16.msra.mxu0 %v2640
        %2678 = vmatprep.subr.bf16.mxu0 0
        %2679 = vmatpush1.bf16.msra.mxu0 %v2641
        %2680 = vmatprep.subr.bf16.mxu0 0
        %2681 = vmatpush1.bf16.msra.mxu0 %v2642
        %2682 = vmatprep.subr.bf16.mxu0 0
        %2683 = vmatpush1.bf16.msra.mxu0 %v2643
        %2684 = vmatprep.subr.bf16.mxu0 0
        %2685 = vmatpush1.bf16.msra.mxu0 %v2644
        %2686 = vmatprep.subr.bf16.mxu0 0
        %2687 = vmatpush1.bf16.msra.mxu0 %v2645
        %2688 = vmatprep.subr.bf16.mxu0 0
        %2689 = vmatpush1.bf16.msra.mxu0 %v2646
        %2690 = vmatprep.subr.bf16.mxu0 0
        %2691 = vmatpush1.bf16.msra.mxu0 %v2647
        %2692 = vmatprep.subr.bf16.mxu0 0
        %2693 = vmatpush1.bf16.msra.mxu0 %v2648
        %2694 = vmatprep.subr.bf16.mxu0 0
        %2695 = vmatpush1.bf16.msra.mxu0 %v2649
        %2696 = vmatprep.subr.bf16.mxu0 0
        %2697 = vmatpush1.bf16.msra.mxu0 %v2650
        %2698 = vmatprep.subr.bf16.mxu0 0
        %2699 = vmatpush1.bf16.msra.mxu0 %v2651
        %2700 = vmatprep.mubr.bf16.mxu0 %v2518
        %2701 = vmatmul.mubr.bf16.gmra.mrb[0].mxu0 %v2517
        %v2702 = vpop.f32.mrb[0].mxu0
        %v2703 = vadd.f32 %v2570, %v2702
        %v2704 = vpop.f32.mrb[0].mxu0
        %v2705 = vpop.f32.mrb[0].mxu0
        %v2706 = vadd.f32 %v2570, %v2705
        %v2707 = vpop.f32.mrb[0].mxu0
        %2708 = vmatprep.mubr.bf16.mxu0 %v2520
        %2709 = vmatmul.mubr.bf16.gmra.mrb[0].mxu0 %v2519
        %v2710 = vpop.f32.mrb[0].mxu0
        %v2711 = vadd.f32 %v2570, %v2710
        %v2712 = vpop.f32.mrb[0].mxu0
        %v2713 = vpop.f32.mrb[0].mxu0
        %v2714 = vadd.f32 %v2570, %v2713
        %v2715 = vpop.f32.mrb[0].mxu0
        %2716 = vmatprep.mubr.bf16.mxu0 %v2522
        %2717 = vmatmul.mubr.bf16.gmra.mrb[0].mxu0 %v2521
        %v2718 = vpop.f32.mrb[0].mxu0
        %v2719 = vadd.f32 %v2570, %v2718
        %v2720 = vpop.f32.mrb[0].mxu0
        %v2721 = vpop.f32.mrb[0].mxu0
        %v2722 = vadd.f32 %v2570, %v2721
        %v2723 = vpop.f32.mrb[0].mxu0
        %2724 = vmatprep.mubr.bf16.mxu0 %v2524
        %2725 = vmatmul.mubr.bf16.gmra.mrb[0].mxu0 %v2523
        %v2726 = vpop.f32.mrb[0].mxu0
        %v2727 = vadd.f32 %v2570, %v2726
        %v2728 = vpop.f32.mrb[0].mxu0
        %v2729 = vpop.f32.mrb[0].mxu0
        %v2730 = vadd.f32 %v2570, %v2729
        %v2731 = vpop.f32.mrb[0].mxu0
        %2732 = vmatprep.mubr.bf16.mxu0 %v2526
        %2733 = vmatmul.mubr.bf16.gmra.mrb[0].mxu0 %v2525
        %v2734 = vpop.f32.mrb[0].mxu0
        %v2735 = vadd.f32 %v2570, %v2734
        %v2736 = vpop.f32.mrb[0].mxu0
        %v2737 = vpop.f32.mrb[0].mxu0
        %v2738 = vadd.f32 %v2570, %v2737
        %v2739 = vpop.f32.mrb[0].mxu0
        %2740 = vmatprep.mubr.bf16.mxu0 %v2528
        %2741 = vmatmul.mubr.bf16.gmra.mrb[0].mxu0 %v2527
        %v2742 = vpop.f32.mrb[0].mxu0
        %v2743 = vadd.f32 %v2570, %v2742
        %v2744 = vpop.f32.mrb[0].mxu0
        %v2745 = vpop.f32.mrb[0].mxu0
        %v2746 = vadd.f32 %v2570, %v2745
        %v2747 = vpop.f32.mrb[0].mxu0
        %2748 = vmatprep.mubr.bf16.mxu0 %v2530
        %2749 = vmatmul.mubr.bf16.gmra.mrb[0].mxu0 %v2529
        %v2750 = vpop.f32.mrb[0].mxu0
        %v2751 = vadd.f32 %v2570, %v2750
        %v2752 = vpop.f32.mrb[0].mxu0
        %v2753 = vpop.f32.mrb[0].mxu0
        %v2754 = vadd.f32 %v2570, %v2753
        %v2755 = vpop.f32.mrb[0].mxu0
        %2756 = vmatprep.mubr.bf16.mxu0 %v2532
        %2757 = vmatmul.mubr.bf16.gmra.mrb[0].mxu0 %v2531
        %v2758 = vpop.f32.mrb[0].mxu0
        %v2759 = vadd.f32 %v2570, %v2758
        %v2760 = vpop.f32.mrb[0].mxu0
        %v2761 = vpop.f32.mrb[0].mxu0
        %v2762 = vadd.f32 %v2570, %v2761
        %v2763 = vpop.f32.mrb[0].mxu0
        %2764 = vdwg.mxu0
        %v2765 = vadd.f32 %v2703, %v373
        %v2766 = vadd.f32 %v2706, %v374
        %v2767 = vadd.f32 %v2711, %v375
        %v2768 = vadd.f32 %v2714, %v376
        %v2769 = vadd.f32 %v2719, %v377
        %v2770 = vadd.f32 %v2722, %v378
        %v2771 = vadd.f32 %v2727, %v379
        %v2772 = vadd.f32 %v2730, %v380
        %v2773 = vadd.f32 %v2735, %v381
        %v2774 = vadd.f32 %v2738, %v382
        %v2775 = vadd.f32 %v2743, %v383
        %v2776 = vadd.f32 %v2746, %v384
        %v2777 = vadd.f32 %v2751, %v385
        %v2778 = vadd.f32 %v2754, %v386
        %v2779 = vadd.f32 %v2759, %v387
        %v2780 = vadd.f32 %v2762, %v388
        %2781 = vst [vmem:[%s369] sm:$0xff] %v2765
        %2782 = vst [vmem:[%s369 + $0x8] sm:$0xff] %v2766
        %2783 = vst [vmem:[%s369 + $0x10] sm:$0xff] %v2767
        %2784 = vst [vmem:[%s369 + $0x18] sm:$0xff] %v2768
        %2785 = vst [vmem:[%s369 + $0x20] sm:$0xff] %v2769
        %2786 = vst [vmem:[%s369 + $0x28] sm:$0xff] %v2770
        %2787 = vst [vmem:[%s369 + $0x30] sm:$0xff] %v2771
        %2788 = vst [vmem:[%s369 + $0x38] sm:$0xff] %v2772
        %2789 = vst [vmem:[%s369 + $0x40] sm:$0xff] %v2773
        %2790 = vst [vmem:[%s369 + $0x48] sm:$0xff] %v2774
        %2791 = vst [vmem:[%s369 + $0x50] sm:$0xff] %v2775
        %2792 = vst [vmem:[%s369 + $0x58] sm:$0xff] %v2776
        %2793 = vst [vmem:[%s369 + $0x60] sm:$0xff] %v2777
        %2794 = vst [vmem:[%s369 + $0x68] sm:$0xff] %v2778
        %2795 = vst [vmem:[%s369 + $0x70] sm:$0xff] %v2779
        %2796 = vst [vmem:[%s369 + $0x78] sm:$0xff] %v2780
        %s2797 = sand.u32 %s187, 1
        %s2798 = scalar_lea.sflag [#allocation4], %s2797
        %s2799 = sand.u32 %s187, 1
        %s2800 = smul.addr %s2799, 128
        %s2801 = scalar_lea.vmem [#allocation13], %s2800
        // Predicated region
        $region73: #{tpu_custom_call.1} parent=47 // pred_check
          %p2802 = pneg %p197
        $region74: #{tpu_custom_call.1} parent=47 // pred_check_branch
          %2804 = sbr.rel (%p2802) target = $region76
        $region75: #{tpu_custom_call.1} parent=47 // pred_region
          %s2805 = smul.u32 16, %s27
          %s2807 = ssub.s32 2048, 2048
          %2808 = vsyncadd %s2798, %s2807
          %s2809 = smul.addr %s2805, 128
          %s2810 = scalar_lea.hbm %s7, %s2809
          %s2811 = sshll.u32 %s2801, 4
          %s2812 = int_to_ptr.vmem [resolvable:$true] %s2811
          %2817 = dma.vmem_to_hbm [thread:$0]  %s2812, 2048, %s2810, %s2798, 128, 128, 8
        $region76: #{tpu_custom_call.1} parent=47 // pred_fallthru
          _
      $region48: #{tpu_custom_call.1} parent=5 // pred_fallthru
        _
      %p2818 = scmp.le.s32.totalorder 2, %s22
      // Predicated region
      $region77: #{tpu_custom_call.1} parent=5 // pred_check
        %p2819 = pneg %p2818
      $region78: #{tpu_custom_call.1} parent=5 // pred_check_branch
        %2821 = sbr.rel (%p2819) target = $region80
      $region79: #{tpu_custom_call.1} parent=5 // pred_region
        %s2822 = ssub.s32 %s22, 2
        // Predicated region
        $region81: #{tpu_custom_call.1} parent=79 // pred_check
          %p2823 = pneg %p203
        $region82: #{tpu_custom_call.1} parent=79 // pred_check_branch
          %2825 = sbr.rel (%p2823) target = $region84
        $region83: #{tpu_custom_call.1} parent=79 // pred_region
          %s2826 = sand.u32 %s188, 1
          %s2827 = scalar_lea.sflag [#allocation4], %s2826
          %s2828 = sand.u32 %s188, 1
          %s2829 = smul.addr %s2828, 128
          %s2830 = scalar_lea.vmem [#allocation13], %s2829
          %2831 = dma.done %s2827, 2048
        $region84: #{tpu_custom_call.1} parent=79 // pred_fallthru
          _
      $region80: #{tpu_custom_call.1} parent=5 // pred_fallthru
        _
    $region6: #{tpu_custom_call.1} parent=1 // loop_footer
      %s26 = sadd.s32 1, %s22
    $region7: #{tpu_custom_call.1} parent=1 // loop_footer_branch
      %21 = sbr.rel target = $region3
    $region8: #{tpu_custom_call.1} parent=1 // loop_exit
      _
    %2832 = vsyncpa [#allocation3], 1
    %s2833 = scalar_lea.sflag [#allocation3], 1
    %2834 = vsyncpa %s2833, 1
    %2835 = vsyncpa [#allocation6], 1
    %2836 = vsyncpa [#allocation9], 1
    %2837 = vsyncpa [#allocation12], 1
    %2838 = vsyncpa [#allocation4], 1
    %s2839 = scalar_lea.sflag [#allocation4], 1
    %2840 = vsyncpa %s2839, 1

</llo_original>
